<compile_context>
chip_gen: v6e
topology: v6e:2x2x1
jax: 0.10.0
libtpu: 0.0.40
codegen_flags: <defaults>
</compile_context>

<pallas_src>
import functools
import math

import jax
import jax.numpy as jnp
from jax import lax
from jax.experimental import pallas as pl
from jax.experimental.pallas import tpu as pltpu

LN_EPS = 1e-5     # torch.nn.LayerNorm default eps
L2_EPS = 1e-12    # torch.nn.functional.normalize default eps

# Rows of the packed f32 bias/LN slab (per depth).
_ROW_LN1_G, _ROW_LN1_B, _ROW_QKV_B, _ROW_PROJ_B = 0, 1, 2, 3
_ROW_LN2_G, _ROW_LN2_B, _ROW_FC1_B, _ROW_FC2_B = 4, 5, 6, 7
_N_BIAS_ROWS = 8


def _layernorm(x, gamma, beta):
    mu = jnp.mean(x, axis=-1, keepdims=True)
    var = jnp.mean((x - mu) ** 2, axis=-1, keepdims=True)
    return (x - mu) * lax.rsqrt(var + LN_EPS) * gamma + beta


def _gelu_tanh(x):
    # tanh-approx GELU (EUP path).  Accuracy delta vs erf is well inside the test tolerance.
    c = math.sqrt(2.0 / math.pi)
    return 0.5 * x * (1.0 + jnp.tanh(c * (x + 0.044715 * x * x * x)))


def _gelu_erf(x):
    # torch.nn.GELU() default (erf based) -- used by the pure-JAX reference only.
    return 0.5 * x * (1.0 + lax.erf(x * (1.0 / math.sqrt(2.0))))


# ---------------------------------------------------------------------------
# Fused layer kernel: one grid step = one (Bblk*C, N) activation slab for one
# transformer block (depth = grid axis 1, output slab resident across it).
# ---------------------------------------------------------------------------
def _layer_kernel(x_ref, qkvw_ref, fc1w_ref, fc2w_ref, pw_ref, bias_ref, o_ref,
                  *, n_batch, channels, inner, hidden, scale):
    C = channels
    N = o_ref.shape[-1]
    R = N // C
    d = pl.program_id(1)

    @pl.when(d == 0)
    def _seed():
        # First block of the stack: seed the resident activation slab from the input.
        o_ref[...] = x_ref[...]

    x = o_ref[...]                                            # (MB, N) f32

    bias = bias_ref[d]                                        # (8, Wb) f32 (resident)
    ln1_g = bias[_ROW_LN1_G:_ROW_LN1_G + 1, 0:N]
    ln1_b = bias[_ROW_LN1_B:_ROW_LN1_B + 1, 0:N]
    qkv_b = bias[_ROW_QKV_B:_ROW_QKV_B + 1, 0:2 * inner + N]
    proj_b = bias[_ROW_PROJ_B:_ROW_PROJ_B + 1, 0:N]
    ln2_g = bias[_ROW_LN2_G:_ROW_LN2_G + 1, 0:N]
    ln2_b = bias[_ROW_LN2_B:_ROW_LN2_B + 1, 0:N]
    fc1_b = bias[_ROW_FC1_B:_ROW_FC1_B + 1, 0:hidden]
    fc2_b = bias[_ROW_FC2_B:_ROW_FC2_B + 1, 0:N]

    # ---- norm1 + fused q|k|v projection (single (2*inner+N)-wide bf16 matmul) ----
    xn = _layernorm(x, ln1_g, ln1_b)
    qkv = jnp.dot(xn.astype(jnp.bfloat16), qkvw_ref[d],
                  preferred_element_type=jnp.float32) + qkv_b
    q = qkv[:, 0:inner]
    k = qkv[:, inner:2 * inner]
    v = qkv[:, 2 * inner:2 * inner + N]                       # columns pre-permuted on host

    # F.normalize(p=2, dim=-1); the qk scale is folded into q's rsqrt factor (free VPU op).
    qn = q * (lax.rsqrt(jnp.maximum(jnp.sum(q * q, -1, keepdims=True),
                                    L2_EPS * L2_EPS)) * scale)
    kn = k * lax.rsqrt(jnp.maximum(jnp.sum(k * k, -1, keepdims=True),
                                   L2_EPS * L2_EPS))

    # ---- per-batch channel attention (all f32, row slices tile-aligned) ----
    # followed by the torch scramble folded into the proj contraction:
    #   a = sum_jc  (y[:, jc*C:(jc+1)*C])^T @ proj_w[jc*C:(jc+1)*C, :]
    parts = []
    for b in range(n_batch):
        r0 = b * C
        qi = qn[r0:r0 + C, :]
        ki = kn[r0:r0 + C, :]
        vi = v[r0:r0 + C, :]
        logits = lax.dot_general(ki, qi, (((1,), (1,)), ((), ())),
                                 preferred_element_type=jnp.float32)     # (C, C)
        logits = logits - jnp.max(logits, axis=-1, keepdims=True)
        pexp = jnp.exp(logits)
        attn = pexp * pl.reciprocal(jnp.sum(pexp, axis=-1, keepdims=True), approx=True)
        yb = jnp.dot(attn, vi, preferred_element_type=jnp.float32)       # (C, N)
        ybt = yb.T                                                       # (N, C) (one small transpose)

        acc = None
        for jc in range(R):
            lhs = ybt[jc * C:(jc + 1) * C, :]                            # (C, C) f32
            rhs = pw_ref[d, jc * C:(jc + 1) * C, :]                      # (C, N) f32 (resident)
            t = jnp.dot(lhs, rhs, preferred_element_type=jnp.float32)
            acc = t if acc is None else acc + t
        parts.append(acc)
    a = parts[0] if n_batch == 1 else jnp.concatenate(parts, axis=0)     # (MB, N)
    x = x + (a + proj_b)

    # ---- norm2 + MLP (fc1 -> GELU -> fc2) + residual ----
    xn2 = _layernorm(x, ln2_g, ln2_b)
    h = jnp.dot(xn2.astype(jnp.bfloat16), fc1w_ref[d],
                preferred_element_type=jnp.float32) + fc1_b
    h = _gelu_tanh(h)
    y = jnp.dot(h.astype(jnp.bfloat16), fc2w_ref[d],
                preferred_element_type=jnp.float32) + fc2_b
    o_ref[...] = x + y


# ---------------------------------------------------------------------------
# Host-side parameter packing: few stacked slabs instead of 17 tiny inputs.
# ---------------------------------------------------------------------------
def prepare_layer_params(block_params, channels):
    N = block_params[0]["v_w"].shape[0]
    inner = block_params[0]["q_w"].shape[1]
    hidden = block_params[0]["fc1_w"].shape[1]
    C = channels
    assert N % C == 0, "scramble path requires sequence % channels == 0"
    assert C % 8 == 0, "kernel requires channels % 8 == 0 (f32 sublane tile)"
    R = N // C
    # new column jc*C + i  <-  old column i*R + jc  (makes the scramble blocks contiguous)
    perm = jnp.arange(N).reshape(C, R).T.reshape(N)
    Wb = max(N, 2 * inner + N, hidden)

    def padrow(a):
        return jnp.pad(a, ((0, 0), (0, Wb - a.shape[1])))

    qkvw, fc1w, fc2w, pww, biases = [], [], [], [], []
    for bp in block_params:
        vw_p = bp["v_w"][:, perm]
        vb_p = bp["v_b"][:, perm]
        qkvw.append(jnp.concatenate([bp["q_w"], bp["k_w"], vw_p], axis=1)
                    .astype(jnp.bfloat16))
        fc1w.append(bp["fc1_w"].astype(jnp.bfloat16))
        fc2w.append(bp["fc2_w"].astype(jnp.bfloat16))
        pww.append(bp["proj_w"].astype(jnp.float32))
        qkv_b = jnp.concatenate([bp["q_b"], bp["k_b"], vb_p], axis=1)
        biases.append(jnp.concatenate(
            [padrow(bp["ln1_g"]), padrow(bp["ln1_b"]), padrow(qkv_b),
             padrow(bp["proj_b"]), padrow(bp["ln2_g"]), padrow(bp["ln2_b"]),
             padrow(bp["fc1_b"]), padrow(bp["fc2_b"])], axis=0))

    return {
        "qkv_w": jnp.stack(qkvw),   # (depth, N, 2*inner+N) bf16
        "fc1_w": jnp.stack(fc1w),   # (depth, N, hidden)    bf16
        "fc2_w": jnp.stack(fc2w),   # (depth, hidden, N)    bf16
        "proj_w": jnp.stack(pww),   # (depth, N, N)         f32
        "bias": jnp.stack(biases),  # (depth, 8, Wb)        f32
    }


def _pick_block_batch(B, C, target_m=256):
    """Prefer >=2 batch grid steps (core sharding) while keeping Bblk*C <= target_m."""
    divisors = [d for d in range(1, B + 1) if B % d == 0]
    cands = [d for d in divisors if B // d >= 2] or divisors
    fitting = [d for d in cands if d * C <= target_m] or [cands[0]]
    return max(fitting)


# ---------------------------------------------------------------------------
# Layer forward: ONE pallas_call for the whole stacked layer.
# ---------------------------------------------------------------------------
def channel_transformer_layer_forward(x_blc, params, *, block_batch=None):
    B, L, C = x_blc.shape
    depth, N = params["qkv_w"].shape[0], params["qkv_w"].shape[1]
    inner = (params["qkv_w"].shape[2] - N) // 2
    hidden = params["fc1_w"].shape[2]
    assert L == N, "input length must equal the block's `sequence`"
    assert N % C == 0 and C % 8 == 0
    Bblk = _pick_block_batch(B, C) if block_batch is None else block_batch
    assert B % Bblk == 0
    MB = Bblk * C
    scale = float(N) ** -0.5          # qk_scale=None -> sequence ** -0.5

    # Hoisted layout plumbing: (B, L, C) -> lane-dense (B*C, N), once per layer.
    x2 = jnp.transpose(x_blc, (0, 2, 1)).reshape(B * C, N).astype(jnp.float32)

    def resident(name):
        shp = tuple(params[name].shape)
        # Full-array block + constant index_map -> fetched once, VMEM-resident;
        # depth is indexed inside the kernel (no per-step weight DMAs).
        return pl.BlockSpec(shp, lambda b, d: (0,) * len(shp))

    grid_spec = pltpu.PrefetchScalarGridSpec(
        num_scalar_prefetch=0,
        grid=(B // Bblk, depth),          # depth innermost -> resident output slab
        in_specs=[pl.BlockSpec((MB, N), lambda b, d: (b, 0)),  # x: index ignores d (no re-DMA)
                  resident("qkv_w"), resident("fc1_w"), resident("fc2_w"),
                  resident("proj_w"), resident("bias")],
        out_specs=pl.BlockSpec((MB, N), lambda b, d: (b, 0)),
    )

    flops = 2 * depth * B * C * (N * (2 * inner + N)      # fused qkv
                                 + C * inner + C * N      # attention
                                 + N * N                  # scramble-folded proj
                                 + 2 * N * hidden)        # MLP
    transcendentals = depth * B * C * (C + hidden + 4)
    weight_bytes = sum(int(params[k].size) * params[k].dtype.itemsize
                       for k in ("qkv_w", "fc1_w", "fc2_w", "proj_w", "bias"))
    bytes_accessed = 2 * B * C * N * 4 + weight_bytes

    out = pl.pallas_call(
        functools.partial(_layer_kernel, n_batch=Bblk, channels=C,
                          inner=inner, hidden=hidden, scale=scale),
        out_shape=jax.ShapeDtypeStruct((B * C, N), jnp.float32),
        grid_spec=grid_spec,
        input_output_aliases={0: 0},      # residual slab accumulates in place
        compiler_params=pltpu.CompilerParams(
            dimension_semantics=("parallel", "arbitrary")),
        cost_estimate=pl.CostEstimate(flops=flops,
                                      transcendentals=transcendentals,
                                      bytes_accessed=bytes_accessed),
    )(x2, params["qkv_w"], params["fc1_w"], params["fc2_w"],
      params["proj_w"], params["bias"])

    return jnp.transpose(out.reshape(B, C, N), (0, 2, 1))   # back to (B, L, C)


# ---------------------------------------------------------------------------
# Deterministic parameter init (shapes follow the module's __init__)
# ---------------------------------------------------------------------------
def init_block_params(key, sequence, factor, mlp_ratio):
    N = sequence
    inner = int(N * factor)
    hidden = int(N * mlp_ratio)
    ks = jax.random.split(key, 10)

    def linear(kw, kb, fan_in, fan_out):
        bound = 1.0 / math.sqrt(fan_in)
        w = jax.random.uniform(kw, (fan_in, fan_out), jnp.float32, -bound, bound)
        b = jax.random.uniform(kb, (1, fan_out), jnp.float32, -bound, bound)
        return w, b

    qk_w, qk_b = linear(ks[0], ks[1], N, 2 * inner)   # nn.Linear(sequence, inner*2)
    v_w, v_b = linear(ks[2], ks[3], N, N)             # nn.Linear(sequence, sequence)
    proj_w, proj_b = linear(ks[4], ks[5], N, N)       # nn.Linear(sequence, sequence)
    fc1_w, fc1_b = linear(ks[6], ks[7], N, hidden)    # MLP fc1
    fc2_w, fc2_b = linear(ks[8], ks[9], hidden, N)    # MLP fc2

    return {
        "scale": N ** (-0.5),
        "ln1_g": jnp.ones((1, N), jnp.float32), "ln1_b": jnp.zeros((1, N), jnp.float32),
        "ln2_g": jnp.ones((1, N), jnp.float32), "ln2_b": jnp.zeros((1, N), jnp.float32),
        "q_w": qk_w[:, :inner], "q_b": qk_b[:, :inner],
        "k_w": qk_w[:, inner:], "k_b": qk_b[:, inner:],
        "v_w": v_w, "v_b": v_b,
        "proj_w": proj_w, "proj_b": proj_b,
        "fc1_w": fc1_w, "fc1_b": fc1_b,
        "fc2_w": fc2_w, "fc2_b": fc2_b,
    }


# ---------------------------------------------------------------------------
# Pure-JAX reference (mirrors the torch forward, including the literal
# transpose+reshape scramble; wide projections use the same bf16-operand /
# f32-accumulate policy as the kernel, attention/proj stay f32).
# ---------------------------------------------------------------------------
def _mm_bf16(a, b):
    return jnp.dot(a.astype(jnp.bfloat16), b.astype(jnp.bfloat16),
                   preferred_element_type=jnp.float32)


def reference_block(x_bcn, p):
    B, C, N = x_bcn.shape
    hp = lax.Precision.HIGHEST
    shortcut = x_bcn
    xn = _layernorm(x_bcn, p["ln1_g"], p["ln1_b"])
    q = _mm_bf16(xn, p["q_w"]) + p["q_b"]
    k = _mm_bf16(xn, p["k_w"]) + p["k_b"]
    v = _mm_bf16(xn, p["v_w"]) + p["v_b"]
    q = q / jnp.maximum(jnp.sqrt(jnp.sum(q * q, -1, keepdims=True)), L2_EPS)
    k = k / jnp.maximum(jnp.sqrt(jnp.sum(k * k, -1, keepdims=True)), L2_EPS)
    attn = jnp.einsum("bci,bdi->bcd", k, q, precision=hp) * p["scale"]
    attn = jax.nn.softmax(attn, axis=-1)
    y = jnp.einsum("bcd,bdn->bcn", attn, v, precision=hp)
    z = jnp.transpose(y, (0, 2, 1)).reshape(B, C, N)          # the torch scramble
    z = jnp.einsum("bcn,nm->bcm", z, p["proj_w"], precision=hp) + p["proj_b"]
    x = shortcut + z
    xn2 = _layernorm(x, p["ln2_g"], p["ln2_b"])
    h = _gelu_erf(_mm_bf16(xn2, p["fc1_w"]) + p["fc1_b"])
    return x + _mm_bf16(h, p["fc2_w"]) + p["fc2_b"]


def reference_layer(x_blc, block_params):
    x = jnp.transpose(x_blc, (0, 2, 1))
    for p in block_params:
        x = reference_block(x, p)
    return jnp.transpose(x, (0, 2, 1))


if __name__ == "__main__":
    B = 2
    H, W = 8, 16
    sequence = H * W          # 128 = L = H*W (attention "feature" axis)
    C = 8                     # channels (tokens for channel attention)
    depth = 2
    factor = 0.5              # inner_len = 64
    mlp_ratio = 2.0           # mlp hidden = 256

    key = jax.random.PRNGKey(0)
    kx, kp = jax.random.split(key)
    x = jax.random.normal(kx, (B, sequence, C), jnp.float32)      # (B, L, C)

    block_params = [init_block_params(k, sequence, factor, mlp_ratio)
                    for k in jax.random.split(kp, depth)]
    packed = prepare_layer_params(block_params, C)

    fwd = jax.jit(channel_transformer_layer_forward)   # block_batch heuristic -> 2 batch grid steps
    out = jax.block_until_ready(fwd(x, packed))

    ref = jax.block_until_ready(reference_layer(x, block_params))

    assert out.shape == (B, sequence, C)
    err = float(jnp.max(jnp.abs(out - ref)))
    # Tolerance covers approx-EUP reciprocal, tanh-GELU vs erf-GELU and bf16 operand
    # rounding; structural bugs would produce O(1) errors.
    if not bool(jnp.all(jnp.isfinite(out))) or err > 5e-2:
        raise AssertionError(f"kernel/reference mismatch, max abs err = {err}")
    print("KERNEL_OK")
</pallas_src>

<mosaic_0001>
module attributes {stable_mosaic.version = 11 : i64} {
  func.func @_layer_kernel(%arg0: i32, %arg1: i32, %arg2: memref<8x128xf32, #tpu.memory_space<vmem>>, %arg3: memref<2x128x256xbf16, #tpu.memory_space<vmem>>, %arg4: memref<2x128x256xbf16, #tpu.memory_space<vmem>>, %arg5: memref<2x256x128xbf16, #tpu.memory_space<vmem>>, %arg6: memref<2x128x128xf32, #tpu.memory_space<vmem>>, %arg7: memref<2x8x256xf32, #tpu.memory_space<vmem>>, %arg8: memref<8x128xf32, #tpu.memory_space<vmem>>) attributes {dimension_semantics = [#tpu.dimension_semantics<parallel>, #tpu.dimension_semantics<arbitrary>], iteration_bounds = array<i64: 2, 2>, scalar_prefetch = 0 : i64, scratch_operands = 0 : i64, tpu.core_type = #tpu.core_type<tc>, window_params = [{transform_indices = @transform_0, window_bounds = array<i64: 8, 128>}, {pipeline_mode = #tpu.pipeline_mode<synchronous>, transform_indices = @transform_1, window_bounds = array<i64: 2, 128, 256>}, {pipeline_mode = #tpu.pipeline_mode<synchronous>, transform_indices = @transform_2, window_bounds = array<i64: 2, 128, 256>}, {pipeline_mode = #tpu.pipeline_mode<synchronous>, transform_indices = @transform_3, window_bounds = array<i64: 2, 256, 128>}, {pipeline_mode = #tpu.pipeline_mode<synchronous>, transform_indices = @transform_4, window_bounds = array<i64: 2, 128, 128>}, {pipeline_mode = #tpu.pipeline_mode<synchronous>, transform_indices = @transform_5, window_bounds = array<i64: 2, 8, 256>}, {transform_indices = @transform_6, window_bounds = array<i64: 8, 128>}]} {
    %c0_i32 = arith.constant 0 : i32
    %0 = arith.cmpi eq, %arg1, %c0_i32 : i32
    %1 = arith.extui %0 : i1 to i32
    %c0_i32_0 = arith.constant 0 : i32
    %2 = arith.cmpi ne, %1, %c0_i32_0 : i32
    scf.if %2 {
      %c0_70 = arith.constant 0 : index
      %c0_71 = arith.constant 0 : index
      %227 = vector.load %arg2[%c0_70, %c0_71] : memref<8x128xf32, #tpu.memory_space<vmem>>, vector<8x128xf32>
      %c0_72 = arith.constant 0 : index
      %c0_73 = arith.constant 0 : index
      %228 = vector.load %arg8[%c0_72, %c0_73] : memref<8x128xf32, #tpu.memory_space<vmem>>, vector<8x128xf32>
      tpu.vector_store %arg8[%c0_72, %c0_73], %227 {strides = array<i32>} : memref<8x128xf32, #tpu.memory_space<vmem>>, vector<8x128xf32>,
    } else {
    }
    %c0 = arith.constant 0 : index
    %c0_1 = arith.constant 0 : index
    %3 = vector.load %arg8[%c0, %c0_1] : memref<8x128xf32, #tpu.memory_space<vmem>>, vector<8x128xf32>
    %4 = arith.index_cast %arg1 : i32 to index
    %c0_2 = arith.constant 0 : index
    %c0_3 = arith.constant 0 : index
    %5 = vector.load %arg7[%4, %c0_2, %c0_3] : memref<2x8x256xf32, #tpu.memory_space<vmem>>, vector<1x8x256xf32>
    %6 = vector.shape_cast %5 : vector<1x8x256xf32> to vector<8x256xf32>
    %7 = vector.extract_strided_slice %6 {offsets = [0, 0], sizes = [1, 128], strides = [1, 1]} : vector<8x256xf32> to vector<1x128xf32>
    %8 = vector.extract_strided_slice %6 {offsets = [1, 0], sizes = [1, 128], strides = [1, 1]} : vector<8x256xf32> to vector<1x128xf32>
    %9 = vector.extract_strided_slice %6 {offsets = [2, 0], sizes = [1, 256], strides = [1, 1]} : vector<8x256xf32> to vector<1x256xf32>
    %10 = vector.extract_strided_slice %6 {offsets = [3, 0], sizes = [1, 128], strides = [1, 1]} : vector<8x256xf32> to vector<1x128xf32>
    %11 = vector.extract_strided_slice %6 {offsets = [4, 0], sizes = [1, 128], strides = [1, 1]} : vector<8x256xf32> to vector<1x128xf32>
    %12 = vector.extract_strided_slice %6 {offsets = [5, 0], sizes = [1, 128], strides = [1, 1]} : vector<8x256xf32> to vector<1x128xf32>
    %13 = vector.extract_strided_slice %6 {offsets = [6, 0], sizes = [1, 256], strides = [1, 1]} : vector<8x256xf32> to vector<1x256xf32>
    %14 = vector.extract_strided_slice %6 {offsets = [7, 0], sizes = [1, 128], strides = [1, 1]} : vector<8x256xf32> to vector<1x128xf32>
    %cst = arith.constant dense<0.000000e+00> : vector<8xf32>
    %15 = vector.multi_reduction <add>, %3, %cst [1] : vector<8x128xf32> to vector<8xf32>
    %16 = vector.shape_cast %15 : vector<8xf32> to vector<8x1xf32>
    %cst_4 = arith.constant 1.280000e+02 : f32
    %17 = vector.broadcast %cst_4 : f32 to vector<8x1xf32>
    %18 = arith.divf %16, %17 : vector<8x1xf32>
    %19 = vector.broadcast %18 : vector<8x1xf32> to vector<8x128xf32>
    %20 = arith.subf %3, %19 : vector<8x128xf32>
    %21 = arith.mulf %20, %20 : vector<8x128xf32>
    %cst_5 = arith.constant dense<0.000000e+00> : vector<8xf32>
    %22 = vector.multi_reduction <add>, %21, %cst_5 [1] : vector<8x128xf32> to vector<8xf32>
    %23 = vector.shape_cast %22 : vector<8xf32> to vector<8x1xf32>
    %cst_6 = arith.constant 1.280000e+02 : f32
    %24 = vector.broadcast %cst_6 : f32 to vector<8x1xf32>
    %25 = arith.divf %23, %24 : vector<8x1xf32>
    %26 = vector.broadcast %18 : vector<8x1xf32> to vector<8x128xf32>
    %27 = arith.subf %3, %26 : vector<8x128xf32>
    %cst_7 = arith.constant 9.99999974E-6 : f32
    %28 = vector.broadcast %cst_7 : f32 to vector<8x1xf32>
    %29 = arith.addf %25, %28 : vector<8x1xf32>
    %30 = math.rsqrt %29 : vector<8x1xf32>
    %31 = vector.broadcast %30 : vector<8x1xf32> to vector<8x128xf32>
    %32 = arith.mulf %27, %31 : vector<8x128xf32>
    %33 = vector.broadcast %7 : vector<1x128xf32> to vector<8x128xf32>
    %34 = arith.mulf %32, %33 : vector<8x128xf32>
    %35 = vector.broadcast %8 : vector<1x128xf32> to vector<8x128xf32>
    %36 = arith.addf %34, %35 : vector<8x128xf32>
    %37 = arith.truncf %36 : vector<8x128xf32> to vector<8x128xbf16>
    %38 = arith.index_cast %arg1 : i32 to index
    %c0_8 = arith.constant 0 : index
    %c0_9 = arith.constant 0 : index
    %39 = vector.load %arg3[%38, %c0_8, %c0_9] : memref<2x128x256xbf16, #tpu.memory_space<vmem>>, vector<1x128x256xbf16>
    %40 = vector.shape_cast %39 : vector<1x128x256xbf16> to vector<128x256xbf16>
    %cst_10 = arith.constant dense<0.000000e+00> : vector<8x256xf32>
    %41 = tpu.matmul %37, %40, %cst_10 {dimension_numbers = #tpu.dot_dimension_numbers<[1], [0], [0], [1], [0, 0, 1, 1], [], []>} : vector<8x128xbf16>, vector<128x256xbf16>, vector<8x256xf32> -> vector<8x256xf32>
    %42 = vector.broadcast %9 : vector<1x256xf32> to vector<8x256xf32>
    %43 = arith.addf %41, %42 : vector<8x256xf32>
    %44 = vector.extract_strided_slice %43 {offsets = [0, 0], sizes = [8, 64], strides = [1, 1]} : vector<8x256xf32> to vector<8x64xf32>
    %45 = vector.extract_strided_slice %43 {offsets = [0, 64], sizes = [8, 64], strides = [1, 1]} : vector<8x256xf32> to vector<8x64xf32>
    %46 = vector.extract_strided_slice %43 {offsets = [0, 128], sizes = [8, 128], strides = [1, 1]} : vector<8x256xf32> to vector<8x128xf32>
    %47 = arith.mulf %44, %44 : vector<8x64xf32>
    %cst_11 = arith.constant dense<0.000000e+00> : vector<8xf32>
    %48 = vector.multi_reduction <add>, %47, %cst_11 [1] : vector<8x64xf32> to vector<8xf32>
    %49 = vector.shape_cast %48 : vector<8xf32> to vector<8x1xf32>
    %cst_12 = arith.constant 1.000000e-24 : f32
    %50 = vector.broadcast %cst_12 : f32 to vector<8x1xf32>
    %51 = arith.maximumf %49, %50 : vector<8x1xf32>
    %52 = math.rsqrt %51 : vector<8x1xf32>
    %cst_13 = arith.constant 0.0883883461 : f32
    %53 = vector.broadcast %cst_13 : f32 to vector<8x1xf32>
    %54 = arith.mulf %52, %53 : vector<8x1xf32>
    %55 = vector.broadcast %54 : vector<8x1xf32> to vector<8x64xf32>
    %56 = arith.mulf %44, %55 : vector<8x64xf32>
    %57 = arith.mulf %45, %45 : vector<8x64xf32>
    %cst_14 = arith.constant dense<0.000000e+00> : vector<8xf32>
    %58 = vector.multi_reduction <add>, %57, %cst_14 [1] : vector<8x64xf32> to vector<8xf32>
    %59 = vector.shape_cast %58 : vector<8xf32> to vector<8x1xf32>
    %cst_15 = arith.constant 1.000000e-24 : f32
    %60 = vector.broadcast %cst_15 : f32 to vector<8x1xf32>
    %61 = arith.maximumf %59, %60 : vector<8x1xf32>
    %62 = math.rsqrt %61 : vector<8x1xf32>
    %63 = vector.broadcast %62 : vector<8x1xf32> to vector<8x64xf32>
    %64 = arith.mulf %45, %63 : vector<8x64xf32>
    %cst_16 = arith.constant dense<0.000000e+00> : vector<8x8xf32>
    %65 = tpu.matmul %64, %56, %cst_16 {dimension_numbers = #tpu.dot_dimension_numbers<[1], [1], [0], [0], [0, 0, 1, 0], [], []>} : vector<8x64xf32>, vector<8x64xf32>, vector<8x8xf32> -> vector<8x8xf32>
    %cst_17 = arith.constant dense<0xFF800000> : vector<8xf32>
    %66 = vector.multi_reduction <maximumf>, %65, %cst_17 [1] : vector<8x8xf32> to vector<8xf32>
    %67 = vector.shape_cast %66 : vector<8xf32> to vector<8x1xf32>
    %68 = vector.broadcast %67 : vector<8x1xf32> to vector<8x8xf32>
    %69 = arith.subf %65, %68 : vector<8x8xf32>
    %70 = math.exp %69 : vector<8x8xf32>
    %cst_18 = arith.constant dense<0.000000e+00> : vector<8xf32>
    %71 = vector.multi_reduction <add>, %70, %cst_18 [1] : vector<8x8xf32> to vector<8xf32>
    %72 = vector.shape_cast %71 : vector<8xf32> to vector<8x1xf32>
    %73 = tpu.reciprocal %72 {approx = true} : vector<8x1xf32> -> vector<8x1xf32>
    %74 = vector.broadcast %73 : vector<8x1xf32> to vector<8x8xf32>
    %75 = arith.mulf %70, %74 : vector<8x8xf32>
    %cst_19 = arith.constant dense<0.000000e+00> : vector<8x128xf32>
    %76 = tpu.matmul %75, %46, %cst_19 {dimension_numbers = #tpu.dot_dimension_numbers<[1], [0], [0], [1], [0, 0, 1, 1], [], []>} : vector<8x8xf32>, vector<8x128xf32>, vector<8x128xf32> -> vector<8x128xf32>
    %77 = tpu.transpose %76, [1, 0] : vector<8x128xf32> -> vector<128x8xf32>
    %78 = vector.extract_strided_slice %77 {offsets = [0, 0], sizes = [8, 8], strides = [1, 1]} : vector<128x8xf32> to vector<8x8xf32>
    %79 = arith.index_cast %arg1 : i32 to index
    %c0_20 = arith.constant 0 : index
    %c0_21 = arith.constant 0 : index
    %80 = vector.load %arg6[%79, %c0_20, %c0_21] : memref<2x128x128xf32, #tpu.memory_space<vmem>>, vector<1x8x128xf32>
    %81 = vector.shape_cast %80 : vector<1x8x128xf32> to vector<8x128xf32>
    %cst_22 = arith.constant dense<0.000000e+00> : vector<8x128xf32>
    %82 = tpu.matmul %78, %81, %cst_22 {dimension_numbers = #tpu.dot_dimension_numbers<[1], [0], [0], [1], [0, 0, 1, 1], [], []>} : vector<8x8xf32>, vector<8x128xf32>, vector<8x128xf32> -> vector<8x128xf32>
    %83 = vector.extract_strided_slice %77 {offsets = [8, 0], sizes = [8, 8], strides = [1, 1]} : vector<128x8xf32> to vector<8x8xf32>
    %84 = arith.index_cast %arg1 : i32 to index
    %c8 = arith.constant 8 : index
    %c0_23 = arith.constant 0 : index
    %85 = vector.load %arg6[%84, %c8, %c0_23] : memref<2x128x128xf32, #tpu.memory_space<vmem>>, vector<1x8x128xf32>
    %86 = vector.shape_cast %85 : vector<1x8x128xf32> to vector<8x128xf32>
    %cst_24 = arith.constant dense<0.000000e+00> : vector<8x128xf32>
    %87 = tpu.matmul %83, %86, %cst_24 {dimension_numbers = #tpu.dot_dimension_numbers<[1], [0], [0], [1], [0, 0, 1, 1], [], []>} : vector<8x8xf32>, vector<8x128xf32>, vector<8x128xf32> -> vector<8x128xf32>
    %88 = arith.addf %82, %87 : vector<8x128xf32>
    %89 = vector.extract_strided_slice %77 {offsets = [16, 0], sizes = [8, 8], strides = [1, 1]} : vector<128x8xf32> to vector<8x8xf32>
    %90 = arith.index_cast %arg1 : i32 to index
    %c16 = arith.constant 16 : index
    %c0_25 = arith.constant 0 : index
    %91 = vector.load %arg6[%90, %c16, %c0_25] : memref<2x128x128xf32, #tpu.memory_space<vmem>>, vector<1x8x128xf32>
    %92 = vector.shape_cast %91 : vector<1x8x128xf32> to vector<8x128xf32>
    %cst_26 = arith.constant dense<0.000000e+00> : vector<8x128xf32>
    %93 = tpu.matmul %89, %92, %cst_26 {dimension_numbers = #tpu.dot_dimension_numbers<[1], [0], [0], [1], [0, 0, 1, 1], [], []>} : vector<8x8xf32>, vector<8x128xf32>, vector<8x128xf32> -> vector<8x128xf32>
    %94 = arith.addf %88, %93 : vector<8x128xf32>
    %95 = vector.extract_strided_slice %77 {offsets = [24, 0], sizes = [8, 8], strides = [1, 1]} : vector<128x8xf32> to vector<8x8xf32>
    %96 = arith.index_cast %arg1 : i32 to index
    %c24 = arith.constant 24 : index
    %c0_27 = arith.constant 0 : index
    %97 = vector.load %arg6[%96, %c24, %c0_27] : memref<2x128x128xf32, #tpu.memory_space<vmem>>, vector<1x8x128xf32>
    %98 = vector.shape_cast %97 : vector<1x8x128xf32> to vector<8x128xf32>
    %cst_28 = arith.constant dense<0.000000e+00> : vector<8x128xf32>
    %99 = tpu.matmul %95, %98, %cst_28 {dimension_numbers = #tpu.dot_dimension_numbers<[1], [0], [0], [1], [0, 0, 1, 1], [], []>} : vector<8x8xf32>, vector<8x128xf32>, vector<8x128xf32> -> vector<8x128xf32>
    %100 = arith.addf %94, %99 : vector<8x128xf32>
    %101 = vector.extract_strided_slice %77 {offsets = [32, 0], sizes = [8, 8], strides = [1, 1]} : vector<128x8xf32> to vector<8x8xf32>
    %102 = arith.index_cast %arg1 : i32 to index
    %c32 = arith.constant 32 : index
    %c0_29 = arith.constant 0 : index
    %103 = vector.load %arg6[%102, %c32, %c0_29] : memref<2x128x128xf32, #tpu.memory_space<vmem>>, vector<1x8x128xf32>
    %104 = vector.shape_cast %103 : vector<1x8x128xf32> to vector<8x128xf32>
    %cst_30 = arith.constant dense<0.000000e+00> : vector<8x128xf32>
    %105 = tpu.matmul %101, %104, %cst_30 {dimension_numbers = #tpu.dot_dimension_numbers<[1], [0], [0], [1], [0, 0, 1, 1], [], []>} : vector<8x8xf32>, vector<8x128xf32>, vector<8x128xf32> -> vector<8x128xf32>
    %106 = arith.addf %100, %105 : vector<8x128xf32>
    %107 = vector.extract_strided_slice %77 {offsets = [40, 0], sizes = [8, 8], strides = [1, 1]} : vector<128x8xf32> to vector<8x8xf32>
    %108 = arith.index_cast %arg1 : i32 to index
    %c40 = arith.constant 40 : index
    %c0_31 = arith.constant 0 : index
    %109 = vector.load %arg6[%108, %c40, %c0_31] : memref<2x128x128xf32, #tpu.memory_space<vmem>>, vector<1x8x128xf32>
    %110 = vector.shape_cast %109 : vector<1x8x128xf32> to vector<8x128xf32>
    %cst_32 = arith.constant dense<0.000000e+00> : vector<8x128xf32>
    %111 = tpu.matmul %107, %110, %cst_32 {dimension_numbers = #tpu.dot_dimension_numbers<[1], [0], [0], [1], [0, 0, 1, 1], [], []>} : vector<8x8xf32>, vector<8x128xf32>, vector<8x128xf32> -> vector<8x128xf32>
    %112 = arith.addf %106, %111 : vector<8x128xf32>
    %113 = vector.extract_strided_slice %77 {offsets = [48, 0], sizes = [8, 8], strides = [1, 1]} : vector<128x8xf32> to vector<8x8xf32>
    %114 = arith.index_cast %arg1 : i32 to index
    %c48 = arith.constant 48 : index
    %c0_33 = arith.constant 0 : index
    %115 = vector.load %arg6[%114, %c48, %c0_33] : memref<2x128x128xf32, #tpu.memory_space<vmem>>, vector<1x8x128xf32>
    %116 = vector.shape_cast %115 : vector<1x8x128xf32> to vector<8x128xf32>
    %cst_34 = arith.constant dense<0.000000e+00> : vector<8x128xf32>
    %117 = tpu.matmul %113, %116, %cst_34 {dimension_numbers = #tpu.dot_dimension_numbers<[1], [0], [0], [1], [0, 0, 1, 1], [], []>} : vector<8x8xf32>, vector<8x128xf32>, vector<8x128xf32> -> vector<8x128xf32>
    %118 = arith.addf %112, %117 : vector<8x128xf32>
    %119 = vector.extract_strided_slice %77 {offsets = [56, 0], sizes = [8, 8], strides = [1, 1]} : vector<128x8xf32> to vector<8x8xf32>
    %120 = arith.index_cast %arg1 : i32 to index
    %c56 = arith.constant 56 : index
    %c0_35 = arith.constant 0 : index
    %121 = vector.load %arg6[%120, %c56, %c0_35] : memref<2x128x128xf32, #tpu.memory_space<vmem>>, vector<1x8x128xf32>
    %122 = vector.shape_cast %121 : vector<1x8x128xf32> to vector<8x128xf32>
    %cst_36 = arith.constant dense<0.000000e+00> : vector<8x128xf32>
    %123 = tpu.matmul %119, %122, %cst_36 {dimension_numbers = #tpu.dot_dimension_numbers<[1], [0], [0], [1], [0, 0, 1, 1], [], []>} : vector<8x8xf32>, vector<8x128xf32>, vector<8x128xf32> -> vector<8x128xf32>
    %124 = arith.addf %118, %123 : vector<8x128xf32>
    %125 = vector.extract_strided_slice %77 {offsets = [64, 0], sizes = [8, 8], strides = [1, 1]} : vector<128x8xf32> to vector<8x8xf32>
    %126 = arith.index_cast %arg1 : i32 to index
    %c64 = arith.constant 64 : index
    %c0_37 = arith.constant 0 : index
    %127 = vector.load %arg6[%126, %c64, %c0_37] : memref<2x128x128xf32, #tpu.memory_space<vmem>>, vector<1x8x128xf32>
    %128 = vector.shape_cast %127 : vector<1x8x128xf32> to vector<8x128xf32>
    %cst_38 = arith.constant dense<0.000000e+00> : vector<8x128xf32>
    %129 = tpu.matmul %125, %128, %cst_38 {dimension_numbers = #tpu.dot_dimension_numbers<[1], [0], [0], [1], [0, 0, 1, 1], [], []>} : vector<8x8xf32>, vector<8x128xf32>, vector<8x128xf32> -> vector<8x128xf32>
    %130 = arith.addf %124, %129 : vector<8x128xf32>
    %131 = vector.extract_strided_slice %77 {offsets = [72, 0], sizes = [8, 8], strides = [1, 1]} : vector<128x8xf32> to vector<8x8xf32>
    %132 = arith.index_cast %arg1 : i32 to index
    %c72 = arith.constant 72 : index
    %c0_39 = arith.constant 0 : index
    %133 = vector.load %arg6[%132, %c72, %c0_39] : memref<2x128x128xf32, #tpu.memory_space<vmem>>, vector<1x8x128xf32>
    %134 = vector.shape_cast %133 : vector<1x8x128xf32> to vector<8x128xf32>
    %cst_40 = arith.constant dense<0.000000e+00> : vector<8x128xf32>
    %135 = tpu.matmul %131, %134, %cst_40 {dimension_numbers = #tpu.dot_dimension_numbers<[1], [0], [0], [1], [0, 0, 1, 1], [], []>} : vector<8x8xf32>, vector<8x128xf32>, vector<8x128xf32> -> vector<8x128xf32>
    %136 = arith.addf %130, %135 : vector<8x128xf32>
    %137 = vector.extract_strided_slice %77 {offsets = [80, 0], sizes = [8, 8], strides = [1, 1]} : vector<128x8xf32> to vector<8x8xf32>
    %138 = arith.index_cast %arg1 : i32 to index
    %c80 = arith.constant 80 : index
    %c0_41 = arith.constant 0 : index
    %139 = vector.load %arg6[%138, %c80, %c0_41] : memref<2x128x128xf32, #tpu.memory_space<vmem>>, vector<1x8x128xf32>
    %140 = vector.shape_cast %139 : vector<1x8x128xf32> to vector<8x128xf32>
    %cst_42 = arith.constant dense<0.000000e+00> : vector<8x128xf32>
    %141 = tpu.matmul %137, %140, %cst_42 {dimension_numbers = #tpu.dot_dimension_numbers<[1], [0], [0], [1], [0, 0, 1, 1], [], []>} : vector<8x8xf32>, vector<8x128xf32>, vector<8x128xf32> -> vector<8x128xf32>
    %142 = arith.addf %136, %141 : vector<8x128xf32>
    %143 = vector.extract_strided_slice %77 {offsets = [88, 0], sizes = [8, 8], strides = [1, 1]} : vector<128x8xf32> to vector<8x8xf32>
    %144 = arith.index_cast %arg1 : i32 to index
    %c88 = arith.constant 88 : index
    %c0_43 = arith.constant 0 : index
    %145 = vector.load %arg6[%144, %c88, %c0_43] : memref<2x128x128xf32, #tpu.memory_space<vmem>>, vector<1x8x128xf32>
    %146 = vector.shape_cast %145 : vector<1x8x128xf32> to vector<8x128xf32>
    %cst_44 = arith.constant dense<0.000000e+00> : vector<8x128xf32>
    %147 = tpu.matmul %143, %146, %cst_44 {dimension_numbers = #tpu.dot_dimension_numbers<[1], [0], [0], [1], [0, 0, 1, 1], [], []>} : vector<8x8xf32>, vector<8x128xf32>, vector<8x128xf32> -> vector<8x128xf32>
    %148 = arith.addf %142, %147 : vector<8x128xf32>
    %149 = vector.extract_strided_slice %77 {offsets = [96, 0], sizes = [8, 8], strides = [1, 1]} : vector<128x8xf32> to vector<8x8xf32>
    %150 = arith.index_cast %arg1 : i32 to index
    %c96 = arith.constant 96 : index
    %c0_45 = arith.constant 0 : index
    %151 = vector.load %arg6[%150, %c96, %c0_45] : memref<2x128x128xf32, #tpu.memory_space<vmem>>, vector<1x8x128xf32>
    %152 = vector.shape_cast %151 : vector<1x8x128xf32> to vector<8x128xf32>
    %cst_46 = arith.constant dense<0.000000e+00> : vector<8x128xf32>
    %153 = tpu.matmul %149, %152, %cst_46 {dimension_numbers = #tpu.dot_dimension_numbers<[1], [0], [0], [1], [0, 0, 1, 1], [], []>} : vector<8x8xf32>, vector<8x128xf32>, vector<8x128xf32> -> vector<8x128xf32>
    %154 = arith.addf %148, %153 : vector<8x128xf32>
    %155 = vector.extract_strided_slice %77 {offsets = [104, 0], sizes = [8, 8], strides = [1, 1]} : vector<128x8xf32> to vector<8x8xf32>
    %156 = arith.index_cast %arg1 : i32 to index
    %c104 = arith.constant 104 : index
    %c0_47 = arith.constant 0 : index
    %157 = vector.load %arg6[%156, %c104, %c0_47] : memref<2x128x128xf32, #tpu.memory_space<vmem>>, vector<1x8x128xf32>
    %158 = vector.shape_cast %157 : vector<1x8x128xf32> to vector<8x128xf32>
    %cst_48 = arith.constant dense<0.000000e+00> : vector<8x128xf32>
    %159 = tpu.matmul %155, %158, %cst_48 {dimension_numbers = #tpu.dot_dimension_numbers<[1], [0], [0], [1], [0, 0, 1, 1], [], []>} : vector<8x8xf32>, vector<8x128xf32>, vector<8x128xf32> -> vector<8x128xf32>
    %160 = arith.addf %154, %159 : vector<8x128xf32>
    %161 = vector.extract_strided_slice %77 {offsets = [112, 0], sizes = [8, 8], strides = [1, 1]} : vector<128x8xf32> to vector<8x8xf32>
    %162 = arith.index_cast %arg1 : i32 to index
    %c112 = arith.constant 112 : index
    %c0_49 = arith.constant 0 : index
    %163 = vector.load %arg6[%162, %c112, %c0_49] : memref<2x128x128xf32, #tpu.memory_space<vmem>>, vector<1x8x128xf32>
    %164 = vector.shape_cast %163 : vector<1x8x128xf32> to vector<8x128xf32>
    %cst_50 = arith.constant dense<0.000000e+00> : vector<8x128xf32>
    %165 = tpu.matmul %161, %164, %cst_50 {dimension_numbers = #tpu.dot_dimension_numbers<[1], [0], [0], [1], [0, 0, 1, 1], [], []>} : vector<8x8xf32>, vector<8x128xf32>, vector<8x128xf32> -> vector<8x128xf32>
    %166 = arith.addf %160, %165 : vector<8x128xf32>
    %167 = vector.extract_strided_slice %77 {offsets = [120, 0], sizes = [8, 8], strides = [1, 1]} : vector<128x8xf32> to vector<8x8xf32>
    %168 = arith.index_cast %arg1 : i32 to index
    %c120 = arith.constant 120 : index
    %c0_51 = arith.constant 0 : index
    %169 = vector.load %arg6[%168, %c120, %c0_51] : memref<2x128x128xf32, #tpu.memory_space<vmem>>, vector<1x8x128xf32>
    %170 = vector.shape_cast %169 : vector<1x8x128xf32> to vector<8x128xf32>
    %cst_52 = arith.constant dense<0.000000e+00> : vector<8x128xf32>
    %171 = tpu.matmul %167, %170, %cst_52 {dimension_numbers = #tpu.dot_dimension_numbers<[1], [0], [0], [1], [0, 0, 1, 1], [], []>} : vector<8x8xf32>, vector<8x128xf32>, vector<8x128xf32> -> vector<8x128xf32>
    %172 = arith.addf %166, %171 : vector<8x128xf32>
    %173 = vector.broadcast %10 : vector<1x128xf32> to vector<8x128xf32>
    %174 = arith.addf %172, %173 : vector<8x128xf32>
    %175 = arith.addf %3, %174 : vector<8x128xf32>
    %cst_53 = arith.constant dense<0.000000e+00> : vector<8xf32>
    %176 = vector.multi_reduction <add>, %175, %cst_53 [1] : vector<8x128xf32> to vector<8xf32>
    %177 = vector.shape_cast %176 : vector<8xf32> to vector<8x1xf32>
    %cst_54 = arith.constant 1.280000e+02 : f32
    %178 = vector.broadcast %cst_54 : f32 to vector<8x1xf32>
    %179 = arith.divf %177, %178 : vector<8x1xf32>
    %180 = vector.broadcast %179 : vector<8x1xf32> to vector<8x128xf32>
    %181 = arith.subf %175, %180 : vector<8x128xf32>
    %182 = arith.mulf %181, %181 : vector<8x128xf32>
    %cst_55 = arith.constant dense<0.000000e+00> : vector<8xf32>
    %183 = vector.multi_reduction <add>, %182, %cst_55 [1] : vector<8x128xf32> to vector<8xf32>
    %184 = vector.shape_cast %183 : vector<8xf32> to vector<8x1xf32>
    %cst_56 = arith.constant 1.280000e+02 : f32
    %185 = vector.broadcast %cst_56 : f32 to vector<8x1xf32>
    %186 = arith.divf %184, %185 : vector<8x1xf32>
    %187 = vector.broadcast %179 : vector<8x1xf32> to vector<8x128xf32>
    %188 = arith.subf %175, %187 : vector<8x128xf32>
    %cst_57 = arith.constant 9.99999974E-6 : f32
    %189 = vector.broadcast %cst_57 : f32 to vector<8x1xf32>
    %190 = arith.addf %186, %189 : vector<8x1xf32>
    %191 = math.rsqrt %190 : vector<8x1xf32>
    %192 = vector.broadcast %191 : vector<8x1xf32> to vector<8x128xf32>
    %193 = arith.mulf %188, %192 : vector<8x128xf32>
    %194 = vector.broadcast %11 : vector<1x128xf32> to vector<8x128xf32>
    %195 = arith.mulf %193, %194 : vector<8x128xf32>
    %196 = vector.broadcast %12 : vector<1x128xf32> to vector<8x128xf32>
    %197 = arith.addf %195, %196 : vector<8x128xf32>
    %198 = arith.truncf %197 : vector<8x128xf32> to vector<8x128xbf16>
    %199 = arith.index_cast %arg1 : i32 to index
    %c0_58 = arith.constant 0 : index
    %c0_59 = arith.constant 0 : index
    %200 = vector.load %arg4[%199, %c0_58, %c0_59] : memref<2x128x256xbf16, #tpu.memory_space<vmem>>, vector<1x128x256xbf16>
    %201 = vector.shape_cast %200 : vector<1x128x256xbf16> to vector<128x256xbf16>
    %cst_60 = arith.constant dense<0.000000e+00> : vector<8x256xf32>
    %202 = tpu.matmul %198, %201, %cst_60 {dimension_numbers = #tpu.dot_dimension_numbers<[1], [0], [0], [1], [0, 0, 1, 1], [], []>} : vector<8x128xbf16>, vector<128x256xbf16>, vector<8x256xf32> -> vector<8x256xf32>
    %203 = vector.broadcast %13 : vector<1x256xf32> to vector<8x256xf32>
    %204 = arith.addf %202, %203 : vector<8x256xf32>
    %cst_61 = arith.constant 5.000000e-01 : f32
    %205 = vector.broadcast %cst_61 : f32 to vector<8x256xf32>
    %206 = arith.mulf %205, %204 : vector<8x256xf32>
    %cst_62 = arith.constant 4.471500e-02 : f32
    %207 = vector.broadcast %cst_62 : f32 to vector<8x256xf32>
    %208 = arith.mulf %207, %204 : vector<8x256xf32>
    %209 = arith.mulf %208, %204 : vector<8x256xf32>
    %210 = arith.mulf %209, %204 : vector<8x256xf32>
    %211 = arith.addf %204, %210 : vector<8x256xf32>
    %cst_63 = arith.constant 0.797884583 : f32
    %212 = vector.broadcast %cst_63 : f32 to vector<8x256xf32>
    %213 = arith.mulf %212, %211 : vector<8x256xf32>
    %214 = math.tanh %213 : vector<8x256xf32>
    %cst_64 = arith.constant 1.000000e+00 : f32
    %215 = vector.broadcast %cst_64 : f32 to vector<8x256xf32>
    %216 = arith.addf %215, %214 : vector<8x256xf32>
    %217 = arith.mulf %206, %216 : vector<8x256xf32>
    %218 = arith.truncf %217 : vector<8x256xf32> to vector<8x256xbf16>
    %219 = arith.index_cast %arg1 : i32 to index
    %c0_65 = arith.constant 0 : index
    %c0_66 = arith.constant 0 : index
    %220 = vector.load %arg5[%219, %c0_65, %c0_66] : memref<2x256x128xbf16, #tpu.memory_space<vmem>>, vector<1x256x128xbf16>
    %221 = vector.shape_cast %220 : vector<1x256x128xbf16> to vector<256x128xbf16>
    %cst_67 = arith.constant dense<0.000000e+00> : vector<8x128xf32>
    %222 = tpu.matmul %218, %221, %cst_67 {dimension_numbers = #tpu.dot_dimension_numbers<[1], [0], [0], [1], [0, 0, 1, 1], [], []>} : vector<8x256xbf16>, vector<256x128xbf16>, vector<8x128xf32> -> vector<8x128xf32>
    %223 = vector.broadcast %14 : vector<1x128xf32> to vector<8x128xf32>
    %224 = arith.addf %222, %223 : vector<8x128xf32>
    %225 = arith.addf %175, %224 : vector<8x128xf32>
    %c0_68 = arith.constant 0 : index
    %c0_69 = arith.constant 0 : index
    %226 = vector.load %arg8[%c0_68, %c0_69] : memref<8x128xf32, #tpu.memory_space<vmem>>, vector<8x128xf32>
    tpu.vector_store %arg8[%c0_68, %c0_69], %225 {strides = array<i32>} : memref<8x128xf32, #tpu.memory_space<vmem>>, vector<8x128xf32>,
    return
  }
  func.func @transform_0(%arg0: i32, %arg1: i32) -> (i32, i32) {
    %c0_i32 = arith.constant 0 : i32
    %c0_i32_0 = arith.constant 0 : i32
    return %arg0, %c0_i32 : i32, i32
  }
  func.func @transform_1(%arg0: i32, %arg1: i32) -> (i32, i32, i32) {
    %c0_i32 = arith.constant 0 : i32
    %c0_i32_0 = arith.constant 0 : i32
    %c0_i32_1 = arith.constant 0 : i32
    %c0_i32_2 = arith.constant 0 : i32
    return %c0_i32, %c0_i32_0, %c0_i32_1 : i32, i32, i32
  }
  func.func @transform_2(%arg0: i32, %arg1: i32) -> (i32, i32, i32) {
    %c0_i32 = arith.constant 0 : i32
    %c0_i32_0 = arith.constant 0 : i32
    %c0_i32_1 = arith.constant 0 : i32
    %c0_i32_2 = arith.constant 0 : i32
    return %c0_i32, %c0_i32_0, %c0_i32_1 : i32, i32, i32
  }
  func.func @transform_3(%arg0: i32, %arg1: i32) -> (i32, i32, i32) {
    %c0_i32 = arith.constant 0 : i32
    %c0_i32_0 = arith.constant 0 : i32
    %c0_i32_1 = arith.constant 0 : i32
    %c0_i32_2 = arith.constant 0 : i32
    return %c0_i32, %c0_i32_0, %c0_i32_1 : i32, i32, i32
  }
  func.func @transform_4(%arg0: i32, %arg1: i32) -> (i32, i32, i32) {
    %c0_i32 = arith.constant 0 : i32
    %c0_i32_0 = arith.constant 0 : i32
    %c0_i32_1 = arith.constant 0 : i32
    %c0_i32_2 = arith.constant 0 : i32
    return %c0_i32, %c0_i32_0, %c0_i32_1 : i32, i32, i32
  }
  func.func @transform_5(%arg0: i32, %arg1: i32) -> (i32, i32, i32) {
    %c0_i32 = arith.constant 0 : i32
    %c0_i32_0 = arith.constant 0 : i32
    %c0_i32_1 = arith.constant 0 : i32
    %c0_i32_2 = arith.constant 0 : i32
    return %c0_i32, %c0_i32_0, %c0_i32_1 : i32, i32, i32
  }
  func.func @transform_6(%arg0: i32, %arg1: i32) -> (i32, i32) {
    %c0_i32 = arith.constant 0 : i32
    %c0_i32_0 = arith.constant 0 : i32
    return %arg0, %c0_i32 : i32, i32
  }
}

</mosaic_0001>

<llo_original>
// kernel: channel_transformer_layer_forward.1
$region0: #{channel_transformer_layer_forward.1}
  #allocation0 [shape = 'u32[]', space=smem, size = 0x4, offset = 0x4, fixed_abs, tag = 'smem constant byte address 0x4 - core index']
  #allocation1 [shape = 'u32[144,128]{1,0:T(1,128)}', space=vmem, size = 0x12000, scoped, tag = 'internal scratch']
  %s0 = inlined_call_operand.vmem [shape: f32[16,128], index: 0, kind: input, shape index: {}, may-alias: {0,6}]
  %s1 = inlined_call_operand.hbm [shape: bf16[2,128,256], index: 1, kind: input, shape index: {}]
  %s2 = inlined_call_operand.hbm [shape: bf16[2,128,256], index: 2, kind: input, shape index: {}]
  %s3 = inlined_call_operand.hbm [shape: bf16[2,256,128], index: 3, kind: input, shape index: {}]
  %s4 = inlined_call_operand.hbm [shape: f32[2,128,128], index: 4, kind: input, shape index: {}]
  %s5 = inlined_call_operand.hbm [shape: f32[2,8,256], index: 5, kind: input, shape index: {}]
  %s6 = inlined_call_operand.vmem [shape: f32[16,128], index: 6, kind: output, shape index: {}, may-alias: {0,6}]
  %s7 = sld [smem:[#allocation0]]
  $region81: #{channel_transformer_layer_forward.1} parent=0
    _
  %s9 = ssub.s32 1, %s7
  %s10 = scalar_select 0, %s9, %s7
  $region1: #{channel_transformer_layer_forward.1} parent=0
    #allocation2 [shape = 'u8[131072]{0}', space=vmem, size = 0x20000, scoped, tag = 'input window, operand 1, single buffered']
    #allocation3 [shape = 's32[2]{0}', space=sflag, size = 0x8, scoped, tag = 'scoped memory for channel_transformer_layer_forward.1']
    #allocation4 [shape = 'u8[131072]{0}', space=vmem, size = 0x20000, scoped, tag = 'input window, operand 2, single buffered']
    #allocation5 [shape = 's32[1]{0}', space=sflag, size = 0x4, scoped, tag = 'scoped memory for channel_transformer_layer_forward.1']
    #allocation6 [shape = 'u8[131072]{0}', space=vmem, size = 0x20000, scoped, tag = 'input window, operand 3, single buffered']
    #allocation7 [shape = 'u8[131072]{0}', space=vmem, size = 0x20000, scoped, tag = 'input window, operand 4, single buffered']
    #allocation8 [shape = 's32[1]{0}', space=sflag, size = 0x4, scoped, tag = 'scoped memory for channel_transformer_layer_forward.1']
    #allocation9 [shape = 'u8[16384]{0}', space=vmem, size = 0x4000, scoped, tag = 'input window, operand 5, single buffered']
    %11 = vsyncpa [#allocation3], 0
    %12 = vsyncpa [#allocation5], 0
    %13 = vsyncpa [#allocation8], 0
    loop: start=0, step=1, limit=6
    $region2: #{channel_transformer_layer_forward.1} parent=1 // loop_pre_header
      _
    $region3: #{channel_transformer_layer_forward.1} parent=1 // loop_header
      %s15 = sphi 0, %s19
      %p16 = scmp.ge.s32.totalorder %s15, 6
      %s22 = sphi 0, %s34
      %s23 = sphi 0, %s30
      %s24 = sphi 0, %s22
      %s25 = sphi 0, %s23
      %s26 = sphi 0, %s24
      %s27 = sphi 0, %s25
      %s37 = sphi 0, %s39
      %s40 = sphi 0, %s37
      %s41 = sphi 0, %s40
      %s57 = sphi 0, %s41
      %s61 = sphi 0, %s61
      %s63 = sphi 0, %s61
      %s64 = sphi 0, %s63
      %s78 = sphi 0, %s64
      %s82 = sphi 0, %s82
      %s84 = sphi 0, %s82
      %s85 = sphi 0, %s84
      %s99 = sphi 0, %s85
      %s103 = sphi 0, %s103
      %s105 = sphi 0, %s103
      %s106 = sphi 0, %s105
      %s120 = sphi 0, %s106
      %s124 = sphi 0, %s124
      %s126 = sphi 0, %s124
      %s127 = sphi 0, %s126
      %s141 = sphi 0, %s127
      %s145 = sphi 0, %s145
      %s147 = sphi 0, %s145
      %s148 = sphi 0, %s147
      %s162 = sphi 0, %s148
      %s168 = sphi 0, %s170
      %s171 = sphi 0, %s168
      %s172 = sphi 0, %s171
      %s188 = sphi 0, %s172
    $region4: #{channel_transformer_layer_forward.1} parent=1 // loop_header_branch
      %18 = sbr.rel (%p16) target = $region8
    $region5: #{channel_transformer_layer_forward.1} parent=1 // loop_body
      %s20 = ssub.s32 %s15, 1
      %s21 = ssub.s32 %s15, 2
      %s28 = sadd.s32 1, %s23
      %p29 = scmp.ge.s32.totalorder %s28, 2
      %s30 = scalar_select %p29, 0, %s28
      %s31 = sadd.s32 1, %s22
      %s32 = scalar_select %p29, %s31, %s22
      %p33 = scmp.ge.s32.totalorder %s32, 2
      %s34 = scalar_select %p33, 0, %s32
      %s35 = ssub.s32 %s22, %s34
      %p36 = scmp.eq.s32.totalorder %s35, 0
      %s38 = sadd.s32 %s37, 1
      %s39 = scalar_select %p36, %s37, %s38
      %p42 = pneg %p36
      %p43 = scmp.eq.s32.totalorder %s15, 3
      %p44 = por %p42, %p43
      %p45 = scmp.ne.s32.totalorder %s37, %s40
      %p46 = scmp.eq.s32.totalorder %s15, 0
      %p47 = por %p45, %p46
      %p48 = scmp.ne.s32.totalorder %s37, %s40
      %p49 = scmp.eq.s32.totalorder %s20, 3
      %p50 = por %p48, %p49
      %p51 = scmp.ne.s32.totalorder %s40, %s41
      %p52 = scmp.eq.s32.totalorder %s20, 0
      %p53 = por %p51, %p52
      %p54 = scmp.ne.s32.totalorder %s40, %s41
      %p55 = scmp.eq.s32.totalorder %s21, 3
      %p56 = por %p54, %p55
      %p58 = scmp.ne.s32.totalorder %s41, %s57
      %p59 = scmp.eq.s32.totalorder %s21, 0
      %p60 = por %p58, %p59
      %s62 = sadd.s32 %s61, 1
      %p65 = scmp.eq.s32.totalorder %s15, 3
      %p66 = scmp.ne.s32.totalorder %s61, %s63
      %p67 = scmp.eq.s32.totalorder %s15, 0
      %p68 = por %p66, %p67
      %p69 = scmp.ne.s32.totalorder %s61, %s63
      %p70 = scmp.eq.s32.totalorder %s20, 3
      %p71 = por %p69, %p70
      %p72 = scmp.ne.s32.totalorder %s63, %s64
      %p73 = scmp.eq.s32.totalorder %s20, 0
      %p74 = por %p72, %p73
      %p75 = scmp.ne.s32.totalorder %s63, %s64
      %p76 = scmp.eq.s32.totalorder %s21, 3
      %p77 = por %p75, %p76
      %p79 = scmp.ne.s32.totalorder %s64, %s78
      %p80 = scmp.eq.s32.totalorder %s21, 0
      %p81 = por %p79, %p80
      %s83 = sadd.s32 %s82, 1
      %p86 = scmp.eq.s32.totalorder %s15, 3
      %p87 = scmp.ne.s32.totalorder %s82, %s84
      %p88 = scmp.eq.s32.totalorder %s15, 0
      %p89 = por %p87, %p88
      %p90 = scmp.ne.s32.totalorder %s82, %s84
      %p91 = scmp.eq.s32.totalorder %s20, 3
      %p92 = por %p90, %p91
      %p93 = scmp.ne.s32.totalorder %s84, %s85
      %p94 = scmp.eq.s32.totalorder %s20, 0
      %p95 = por %p93, %p94
      %p96 = scmp.ne.s32.totalorder %s84, %s85
      %p97 = scmp.eq.s32.totalorder %s21, 3
      %p98 = por %p96, %p97
      %p100 = scmp.ne.s32.totalorder %s85, %s99
      %p101 = scmp.eq.s32.totalorder %s21, 0
      %p102 = por %p100, %p101
      %s104 = sadd.s32 %s103, 1
      %p107 = scmp.eq.s32.totalorder %s15, 3
      %p108 = scmp.ne.s32.totalorder %s103, %s105
      %p109 = scmp.eq.s32.totalorder %s15, 0
      %p110 = por %p108, %p109
      %p111 = scmp.ne.s32.totalorder %s103, %s105
      %p112 = scmp.eq.s32.totalorder %s20, 3
      %p113 = por %p111, %p112
      %p114 = scmp.ne.s32.totalorder %s105, %s106
      %p115 = scmp.eq.s32.totalorder %s20, 0
      %p116 = por %p114, %p115
      %p117 = scmp.ne.s32.totalorder %s105, %s106
      %p118 = scmp.eq.s32.totalorder %s21, 3
      %p119 = por %p117, %p118
      %p121 = scmp.ne.s32.totalorder %s106, %s120
      %p122 = scmp.eq.s32.totalorder %s21, 0
      %p123 = por %p121, %p122
      %s125 = sadd.s32 %s124, 1
      %p128 = scmp.eq.s32.totalorder %s15, 3
      %p129 = scmp.ne.s32.totalorder %s124, %s126
      %p130 = scmp.eq.s32.totalorder %s15, 0
      %p131 = por %p129, %p130
      %p132 = scmp.ne.s32.totalorder %s124, %s126
      %p133 = scmp.eq.s32.totalorder %s20, 3
      %p134 = por %p132, %p133
      %p135 = scmp.ne.s32.totalorder %s126, %s127
      %p136 = scmp.eq.s32.totalorder %s20, 0
      %p137 = por %p135, %p136
      %p138 = scmp.ne.s32.totalorder %s126, %s127
      %p139 = scmp.eq.s32.totalorder %s21, 3
      %p140 = por %p138, %p139
      %p142 = scmp.ne.s32.totalorder %s127, %s141
      %p143 = scmp.eq.s32.totalorder %s21, 0
      %p144 = por %p142, %p143
      %s146 = sadd.s32 %s145, 1
      %p149 = scmp.eq.s32.totalorder %s15, 3
      %p150 = scmp.ne.s32.totalorder %s145, %s147
      %p151 = scmp.eq.s32.totalorder %s15, 0
      %p152 = por %p150, %p151
      %p153 = scmp.ne.s32.totalorder %s145, %s147
      %p154 = scmp.eq.s32.totalorder %s20, 3
      %p155 = por %p153, %p154
      %p156 = scmp.ne.s32.totalorder %s147, %s148
      %p157 = scmp.eq.s32.totalorder %s20, 0
      %p158 = por %p156, %p157
      %p159 = scmp.ne.s32.totalorder %s147, %s148
      %p160 = scmp.eq.s32.totalorder %s21, 3
      %p161 = por %p159, %p160
      %p163 = scmp.ne.s32.totalorder %s148, %s162
      %p164 = scmp.eq.s32.totalorder %s21, 0
      %p165 = por %p163, %p164
      %s166 = ssub.s32 %s22, %s34
      %p167 = scmp.eq.s32.totalorder %s166, 0
      %s169 = sadd.s32 %s168, 1
      %s170 = scalar_select %p167, %s168, %s169
      %p173 = pneg %p167
      %p174 = scmp.eq.s32.totalorder %s15, 3
      %p175 = por %p173, %p174
      %p176 = scmp.ne.s32.totalorder %s168, %s171
      %p177 = scmp.eq.s32.totalorder %s15, 0
      %p178 = por %p176, %p177
      %p179 = scmp.ne.s32.totalorder %s168, %s171
      %p180 = scmp.eq.s32.totalorder %s20, 3
      %p181 = por %p179, %p180
      %p182 = scmp.ne.s32.totalorder %s171, %s172
      %p183 = scmp.eq.s32.totalorder %s20, 0
      %p184 = por %p182, %p183
      %p185 = scmp.ne.s32.totalorder %s171, %s172
      %p186 = scmp.eq.s32.totalorder %s21, 3
      %p187 = por %p185, %p186
      %p189 = scmp.ne.s32.totalorder %s172, %s188
      %p190 = scmp.eq.s32.totalorder %s21, 0
      %p191 = por %p189, %p190
      %p192 = scmp.le.s32.totalorder 1, %s15
      %p193 = scmp.lt.s32.totalorder %s15, 5
      %p194 = pnand %p192, %p193
      %p195 = pneg %p194
      // Predicated region
      $region9: #{channel_transformer_layer_forward.1} parent=5 // pred_check
        _
      $region10: #{channel_transformer_layer_forward.1} parent=5 // pred_check_branch
        %197 = sbr.rel (%p194) target = $region12
      $region11: #{channel_transformer_layer_forward.1} parent=5 // pred_region
        %s198 = ssub.s32 %s15, 1
        // Predicated region
        $region13: #{channel_transformer_layer_forward.1} parent=11 // pred_check
          %p199 = pneg %p74
        $region14: #{channel_transformer_layer_forward.1} parent=11 // pred_check_branch
          %201 = sbr.rel (%p199) target = $region16
        $region15: #{channel_transformer_layer_forward.1} parent=11 // pred_region
          %s203 = ssub.s32 4096, 4096
          %204 = vsyncadd [#allocation3], %s203
          %s205 = sshll.u32 [#allocation2], 4
          %s206 = int_to_ptr.vmem [resolvable:$true] %s205
          %211 = dma.hbm_to_vmem [thread:$0]  %s1, 4096, %s206, [#allocation3], 128, 128, 8
        $region16: #{channel_transformer_layer_forward.1} parent=11 // pred_fallthru
          _
        // Predicated region
        $region17: #{channel_transformer_layer_forward.1} parent=11 // pred_check
          %p212 = pneg %p95
        $region18: #{channel_transformer_layer_forward.1} parent=11 // pred_check_branch
          %214 = sbr.rel (%p212) target = $region20
        $region19: #{channel_transformer_layer_forward.1} parent=11 // pred_region
          %s216 = ssub.s32 4096, 4096
          %217 = vsyncadd [#allocation5], %s216
          %s218 = sshll.u32 [#allocation4], 4
          %s219 = int_to_ptr.vmem [resolvable:$true] %s218
          %224 = dma.hbm_to_vmem [thread:$0]  %s2, 4096, %s219, [#allocation5], 128, 128, 8
        $region20: #{channel_transformer_layer_forward.1} parent=11 // pred_fallthru
          _
        // Predicated region
        $region21: #{channel_transformer_layer_forward.1} parent=11 // pred_check
          %p225 = pneg %p116
        $region22: #{channel_transformer_layer_forward.1} parent=11 // pred_check_branch
          %227 = sbr.rel (%p225) target = $region24
        $region23: #{channel_transformer_layer_forward.1} parent=11 // pred_region
          %s229 = ssub.s32 4096, 4096
          %230 = vsyncadd [#allocation5], %s229
          %s231 = sshll.u32 [#allocation6], 4
          %s232 = int_to_ptr.vmem [resolvable:$true] %s231
          %237 = dma.hbm_to_vmem [thread:$0]  %s3, 4096, %s232, [#allocation5], 64, 64, 4
        $region24: #{channel_transformer_layer_forward.1} parent=11 // pred_fallthru
          _
        // Predicated region
        $region25: #{channel_transformer_layer_forward.1} parent=11 // pred_check
          %p238 = pneg %p137
        $region26: #{channel_transformer_layer_forward.1} parent=11 // pred_check_branch
          %240 = sbr.rel (%p238) target = $region28
        $region27: #{channel_transformer_layer_forward.1} parent=11 // pred_region
          %s242 = ssub.s32 4096, 4096
          %243 = vsyncadd [#allocation8], %s242
          %s244 = sshll.u32 [#allocation7], 4
          %s245 = int_to_ptr.vmem [resolvable:$true] %s244
          %250 = dma.hbm_to_vmem [thread:$0]  %s4, 4096, %s245, [#allocation8], 128, 128, 8
        $region28: #{channel_transformer_layer_forward.1} parent=11 // pred_fallthru
          _
        // Predicated region
        $region29: #{channel_transformer_layer_forward.1} parent=11 // pred_check
          %p251 = pneg %p158
        $region30: #{channel_transformer_layer_forward.1} parent=11 // pred_check_branch
          %253 = sbr.rel (%p251) target = $region32
        $region31: #{channel_transformer_layer_forward.1} parent=11 // pred_region
          %s255 = ssub.s32 512, 512
          %256 = vsyncadd [#allocation8], %s255
          %s257 = sshll.u32 [#allocation9], 4
          %s258 = int_to_ptr.vmem [resolvable:$true] %s257
          %263 = dma.hbm_to_vmem [thread:$0]  %s5, 512, %s258, [#allocation8], 256, 256, 16
        $region32: #{channel_transformer_layer_forward.1} parent=11 // pred_fallthru
          _
      $region12: #{channel_transformer_layer_forward.1} parent=5 // pred_fallthru
        _
      %p264 = scmp.lt.s32.totalorder %s15, 4
      // Predicated region
      $region33: #{channel_transformer_layer_forward.1} parent=5 // pred_check
        %p265 = pneg %p264
      $region34: #{channel_transformer_layer_forward.1} parent=5 // pred_check_branch
        %267 = sbr.rel (%p265) target = $region36
      $region35: #{channel_transformer_layer_forward.1} parent=5 // pred_region
        // Predicated region
        $region37: #{channel_transformer_layer_forward.1} parent=35 // pred_check
          %p268 = pneg %p47
        $region38: #{channel_transformer_layer_forward.1} parent=35 // pred_check_branch
          %270 = sbr.rel (%p268) target = $region40
        $region39: #{channel_transformer_layer_forward.1} parent=35 // pred_region
          %p271 = scmp.lt.s32.totalorder %s22, 1
          %s272 = scalar_select %p271, %s22, 1
          %s273 = smul.addr %s272, 8
          %s274 = scalar_lea.vmem %s0, %s273
        $region40: #{channel_transformer_layer_forward.1} parent=35 // pred_fallthru
          _
      $region36: #{channel_transformer_layer_forward.1} parent=5 // pred_fallthru
        _
      %p275 = scmp.le.s32.totalorder 1, %s15
      %p276 = scmp.lt.s32.totalorder %s15, 5
      %p277 = pnand %p275, %p276
      %p278 = pneg %p277
      // Predicated region
      $region41: #{channel_transformer_layer_forward.1} parent=5 // pred_check
        _
      $region42: #{channel_transformer_layer_forward.1} parent=5 // pred_check_branch
        %280 = sbr.rel (%p277) target = $region44
      $region43: #{channel_transformer_layer_forward.1} parent=5 // pred_region
        %s281 = ssub.s32 %s15, 1
        // Predicated region
        $region45: #{channel_transformer_layer_forward.1} parent=43 // pred_check
          %p282 = pneg %p74
        $region46: #{channel_transformer_layer_forward.1} parent=43 // pred_check_branch
          %284 = sbr.rel (%p282) target = $region48
        $region47: #{channel_transformer_layer_forward.1} parent=43 // pred_region
          %285 = dma.done [#allocation3], 4096
        $region48: #{channel_transformer_layer_forward.1} parent=43 // pred_fallthru
          _
        // Predicated region
        $region49: #{channel_transformer_layer_forward.1} parent=43 // pred_check
          %p286 = pneg %p95
        $region50: #{channel_transformer_layer_forward.1} parent=43 // pred_check_branch
          %288 = sbr.rel (%p286) target = $region52
        $region51: #{channel_transformer_layer_forward.1} parent=43 // pred_region
          %289 = dma.done [#allocation5], 4096
        $region52: #{channel_transformer_layer_forward.1} parent=43 // pred_fallthru
          _
        // Predicated region
        $region53: #{channel_transformer_layer_forward.1} parent=43 // pred_check
          %p290 = pneg %p116
        $region54: #{channel_transformer_layer_forward.1} parent=43 // pred_check_branch
          %292 = sbr.rel (%p290) target = $region56
        $region55: #{channel_transformer_layer_forward.1} parent=43 // pred_region
          %293 = dma.done [#allocation5], 4096
        $region56: #{channel_transformer_layer_forward.1} parent=43 // pred_fallthru
          _
        // Predicated region
        $region57: #{channel_transformer_layer_forward.1} parent=43 // pred_check
          %p294 = pneg %p137
        $region58: #{channel_transformer_layer_forward.1} parent=43 // pred_check_branch
          %296 = sbr.rel (%p294) target = $region60
        $region59: #{channel_transformer_layer_forward.1} parent=43 // pred_region
          %297 = dma.done [#allocation8], 4096
        $region60: #{channel_transformer_layer_forward.1} parent=43 // pred_fallthru
          _
        // Predicated region
        $region61: #{channel_transformer_layer_forward.1} parent=43 // pred_check
          %p298 = pneg %p158
        $region62: #{channel_transformer_layer_forward.1} parent=43 // pred_check_branch
          %300 = sbr.rel (%p298) target = $region64
        $region63: #{channel_transformer_layer_forward.1} parent=43 // pred_region
          %301 = dma.done [#allocation8], 512
        $region64: #{channel_transformer_layer_forward.1} parent=43 // pred_fallthru
          _
        %p302 = scmp.lt.s32.totalorder %s24, 1
        %s303 = scalar_select %p302, %s24, 1
        %s304 = smul.addr %s303, 8
        %s305 = scalar_lea.vmem %s0, %s304
        %p306 = pneg %p53
        %p307 = pneg %p50
        %p308 = pneg %p74
        %p309 = pneg %p71
        %p310 = pneg %p95
        %p311 = pneg %p92
        %p312 = pneg %p116
        %p313 = pneg %p113
        %p314 = pneg %p137
        %p315 = pneg %p134
        %p316 = pneg %p158
        %p317 = pneg %p155
        %p318 = pneg %p184
        %p319 = pneg %p181
        %p320 = scmp.lt.s32.totalorder %s24, 1
        %s321 = scalar_select %p320, %s24, 1
        %s322 = smul.addr %s321, 8
        %s323 = scalar_lea.vmem %s6, %s322
        %p324 = scmp.lt.s32.totalorder %s24, 1
        %s325 = scalar_select %p324, %s24, 1
        %s326 = smul.addr %s325, 8
        %s327 = scalar_lea.vmem %s0, %s326
        %p328 = scmp.lt.s32.totalorder %s24, 1
        %s329 = scalar_select %p328, %s24, 1
        %s330 = smul.addr %s329, 8
        %s331 = scalar_lea.vmem %s6, %s330
        %p333 = scmp.eq.s32.totalorder %s25, 0
        // Predicated region
        $region65: #{channel_transformer_layer_forward.1} parent=43 // pred_check
          %p334 = pneg %p333
        $region66: #{channel_transformer_layer_forward.1} parent=43 // pred_check_branch
          %336 = sbr.rel (%p334) target = $region68
        $region67: #{channel_transformer_layer_forward.1} parent=43 // pred_region
          %v337 = vld [vmem:[%s327] sm:$0xff]
          %338 = vst [vmem:[%s331] sm:$0xff] %v337
        $region68: #{channel_transformer_layer_forward.1} parent=43 // pred_fallthru
          _
        %v339 = vld [vmem:[%s331] sm:$0xff]
        %s340 = smul.u32 %s25, 2
        %s341 = smul.addr %s340, 8
        %s342 = scalar_lea.vmem [#allocation9], %s341
        %v343 = vld [vmem:[%s342] sm:$0xff]
        %v344 = vld [vmem:[%s342 + $0x8] sm:$0xff]
        %345 = vadd.xlane.f32.xlu0 %v339
        %v346 = vpop.xlane.xlu0 %345
        %v347 = vrcp.pop 128.0
        %v348 = vmul.f32 %v346, %v347
        %v349 = vsub.f32 %v339, %v348
        %v350 = vmul.f32 %v349, %v349
        %351 = vadd.xlane.f32.xlu0 %v350
        %v352 = vpop.xlane.xlu0 %351
        %v353 = vmul.f32 %v352, %v347
        %v354 = vadd.f32 %v353, 1e-05
        %v355 = vrsqrt.pop %v354
        %v356 = vmul.f32 %v349, %v355
        %v357 = vlaneseq
        %v358 = vshrl.u32 %v357, 7
        %v359 = vsub.s32 0, %v358
        %v360 = vrot.slane %v343, %v359
        %v361 = vmul.f32 %v356, %v360
        %v362 = vlaneseq
        %v363 = vshrl.u32 %v362, 7
        %v364 = vsub.s32 1, %v363
        %v365 = vrot.slane %v343, %v364
        %v366 = vadd.f32 %v361, %v365
        %v367 = vpack.c.bf16 %v366, %v366
        %s368 = smul.u32 %s25, 32
        %s369 = smul.addr %s368, 4
        %s370 = scalar_lea.vmem [#allocation2], %s369
        %v371 = vld [vmem:[%s370] sm:$0xff]
        %v372 = vld [vmem:[%s370 + $0x8] sm:$0xff]
        %v373 = vld [vmem:[%s370 + $0x10] sm:$0xff]
        %v374 = vld [vmem:[%s370 + $0x18] sm:$0xff]
        %v375 = vld [vmem:[%s370 + $0x20] sm:$0xff]
        %v376 = vld [vmem:[%s370 + $0x28] sm:$0xff]
        %v377 = vld [vmem:[%s370 + $0x30] sm:$0xff]
        %v378 = vld [vmem:[%s370 + $0x38] sm:$0xff]
        %v379 = vld [vmem:[%s370 + $0x40] sm:$0xff]
        %v380 = vld [vmem:[%s370 + $0x48] sm:$0xff]
        %v381 = vld [vmem:[%s370 + $0x50] sm:$0xff]
        %v382 = vld [vmem:[%s370 + $0x58] sm:$0xff]
        %v383 = vld [vmem:[%s370 + $0x60] sm:$0xff]
        %v384 = vld [vmem:[%s370 + $0x68] sm:$0xff]
        %v385 = vld [vmem:[%s370 + $0x70] sm:$0xff]
        %v386 = vld [vmem:[%s370 + $0x78] sm:$0xff]
        %v387 = vlaneseq
        %v388 = vshrl.u32 %v387, 7
        %v389 = vsub.s32 2, %v388
        %v390 = vrot.slane %v343, %v389
        %v391 = vlaneseq
        %v392 = vshrl.u32 %v391, 7
        %v393 = vsub.s32 2, %v392
        %v394 = vrot.slane %v344, %v393
        %v411 = vunpack.c.l.b16 %v371
        %v412 = vunpack.c.h.b16 %v371
        %v413 = vunpack.c.l.b16 %v372
        %v414 = vunpack.c.h.b16 %v372
        %v415 = vunpack.c.l.b16 %v373
        %v416 = vunpack.c.h.b16 %v373
        %v417 = vunpack.c.l.b16 %v374
        %v418 = vunpack.c.h.b16 %v374
        %v419 = vunpack.c.l.b16 %v375
        %v420 = vunpack.c.h.b16 %v375
        %v421 = vunpack.c.l.b16 %v376
        %v422 = vunpack.c.h.b16 %v376
        %v423 = vunpack.c.l.b16 %v377
        %v424 = vunpack.c.h.b16 %v377
        %v425 = vunpack.c.l.b16 %v378
        %v426 = vunpack.c.h.b16 %v378
        %v427 = vunpack.c.l.b16 %v379
        %v428 = vunpack.c.h.b16 %v379
        %v429 = vunpack.c.l.b16 %v380
        %v430 = vunpack.c.h.b16 %v380
        %v431 = vunpack.c.l.b16 %v381
        %v432 = vunpack.c.h.b16 %v381
        %v433 = vunpack.c.l.b16 %v382
        %v434 = vunpack.c.h.b16 %v382
        %v435 = vunpack.c.l.b16 %v383
        %v436 = vunpack.c.h.b16 %v383
        %v437 = vunpack.c.l.b16 %v384
        %v438 = vunpack.c.h.b16 %v384
        %v439 = vunpack.c.l.b16 %v385
        %v440 = vunpack.c.h.b16 %v385
        %v441 = vunpack.c.l.b16 %v386
        %v442 = vunpack.c.h.b16 %v386
        %v443 = vpack.c.b16 %v413, %v411
        %v444 = vpack.c.b16 %v414, %v412
        %v445 = vpack.c.b16 %v417, %v415
        %v446 = vpack.c.b16 %v418, %v416
        %v447 = vpack.c.b16 %v421, %v419
        %v448 = vpack.c.b16 %v422, %v420
        %v449 = vpack.c.b16 %v425, %v423
        %v450 = vpack.c.b16 %v426, %v424
        %v451 = vpack.c.b16 %v429, %v427
        %v452 = vpack.c.b16 %v430, %v428
        %v453 = vpack.c.b16 %v433, %v431
        %v454 = vpack.c.b16 %v434, %v432
        %v455 = vpack.c.b16 %v437, %v435
        %v456 = vpack.c.b16 %v438, %v436
        %v457 = vpack.c.b16 %v441, %v439
        %v458 = vpack.c.b16 %v442, %v440
        %475 = vmatprep.subr.bf16.mxu0 %v458
        %476 = vmatpush1.bf16.msra.mxu0 %v457
        %477 = vmatprep.subr.bf16.mxu0 %v456
        %478 = vmatpush1.bf16.msra.mxu0 %v455
        %479 = vmatprep.subr.bf16.mxu0 %v454
        %480 = vmatpush1.bf16.msra.mxu0 %v453
        %481 = vmatprep.subr.bf16.mxu0 %v452
        %482 = vmatpush1.bf16.msra.mxu0 %v451
        %483 = vmatprep.subr.bf16.mxu0 %v450
        %484 = vmatpush1.bf16.msra.mxu0 %v449
        %485 = vmatprep.subr.bf16.mxu0 %v448
        %486 = vmatpush1.bf16.msra.mxu0 %v447
        %487 = vmatprep.subr.bf16.mxu0 %v446
        %488 = vmatpush1.bf16.msra.mxu0 %v445
        %489 = vmatprep.subr.bf16.mxu0 %v444
        %490 = vmatpush1.bf16.msra.mxu0 %v443
        %491 = vmatprep.subr.bf16.mxu0 0
        %492 = vmatpush2.bf16.msra.mxu0 0
        %493 = vmatprep.subr.bf16.mxu0 0
        %494 = vmatpush2.bf16.msra.mxu0 0
        %495 = vmatprep.subr.bf16.mxu0 0
        %496 = vmatpush2.bf16.msra.mxu0 0
        %497 = vmatprep.subr.bf16.mxu0 0
        %498 = vmatpush2.bf16.msra.mxu0 0
        %499 = vmatprep.subr.bf16.mxu0 0
        %500 = vmatpush2.bf16.msra.mxu0 0
        %501 = vmatprep.subr.bf16.mxu0 0
        %502 = vmatpush2.bf16.msra.mxu0 0
        %503 = vmatprep.subr.bf16.mxu0 0
        %504 = vmatpush2.bf16.msra.mxu0 0
        %505 = vmatprep.subr.bf16.mxu0 0
        %506 = vmatpush2.bf16.msra.mxu0 0
        %507 = vmatprep.mubr.bf16.mxu0 0
        %508 = vmatmul.mubr.bf16.gmra.mxu0 %v367
        %v509 = vpop.f32.mrf.mxu0
        %v510 = vadd.f32 %v390, %v509
        %v511 = vpop.f32.mrf.mxu0
        %v512 = vadd.f32 %v394, %v511
        %v513 = vpop.f32.mrf.mxu0
        %v514 = vpop.f32.mrf.mxu0
        %515 = vdwg.mxu0
        %v516 = vmul.f32 %v510, %v510
        %vm517 = vcmask 523264
        %v518 = vsel %vm517, %v516, 0.0
        %519 = vadd.xlane.f32.xlu0 %v518
        %v520 = vpop.xlane.xlu0 %519
        %v521 = vmax.f32 %v520, 1e-24
        %v522 = vrsqrt.pop %v521
        %v523 = vmul.f32 %v522, 0.088388346
        %v524 = vmul.f32 %v510, %v523
        %526 = vrot.lane.b32.xlu0 %v516, 64
        %v527 = vpop.permute.xlu0 %526
        %v529 = vsel %vm517, %v527, 0.0
        %530 = vadd.xlane.f32.xlu0 %v529
        %v531 = vpop.xlane.xlu0 %530
        %v532 = vmax.f32 %v531, 1e-24
        %v533 = vrsqrt.pop %v532
        %v534 = vmul.f32 %v510, %v533
        %536 = vrot.lane.b32.xlu0 %v534, 64
        %v537 = vpop.permute.xlu0 %536
        %v538 = vsel %vm517, %v537, 0
        %v541 = vsel %vm517, %v524, 0
        %543 = vmatprep.subr.mxu0 0.0
        %544 = vmatpush1.xpose.msra.mxu0 0.0
        %545 = vmatprep.subr.mxu0 0.0
        %546 = vmatpush1.xpose.msra.mxu0 0.0
        %547 = vmatprep.subr.mxu0 0.0
        %548 = vmatpush1.xpose.msra.mxu0 0.0
        %549 = vmatprep.subr.mxu0 0.0
        %550 = vmatpush1.xpose.msra.mxu0 0.0
        %551 = vmatprep.subr.mxu0 0.0
        %552 = vmatpush1.xpose.msra.mxu0 0.0
        %553 = vmatprep.subr.mxu0 0.0
        %554 = vmatpush1.xpose.msra.mxu0 0.0
        %555 = vmatprep.subr.mxu0 0.0
        %556 = vmatpush1.xpose.msra.mxu0 0.0
        %557 = vmatprep.subr.mxu0 0.0
        %558 = vmatpush1.xpose.msra.mxu0 0.0
        %559 = vmatprep.subr.mxu0 0.0
        %560 = vmatpush1.xpose.msra.mxu0 0.0
        %561 = vmatprep.subr.mxu0 0.0
        %562 = vmatpush1.xpose.msra.mxu0 0.0
        %563 = vmatprep.subr.mxu0 0.0
        %564 = vmatpush1.xpose.msra.mxu0 0.0
        %565 = vmatprep.subr.mxu0 0.0
        %566 = vmatpush1.xpose.msra.mxu0 0.0
        %567 = vmatprep.subr.mxu0 0.0
        %568 = vmatpush1.xpose.msra.mxu0 0.0
        %569 = vmatprep.subr.mxu0 0.0
        %570 = vmatpush1.xpose.msra.mxu0 0.0
        %571 = vmatprep.subr.mxu0 0.0
        %572 = vmatpush1.xpose.msra.mxu0 0.0
        %573 = vmatprep.subr.mxu0 0.0
        %574 = vmatpush1.xpose.msra.mxu0 %v541
        %575 = vmatprep.subr.mxu0 0.0
        %576 = vmatpush2.xpose.msra.mxu0 0.0
        %577 = vmatprep.subr.mxu0 0.0
        %578 = vmatpush2.xpose.msra.mxu0 0.0
        %579 = vmatprep.subr.mxu0 0.0
        %580 = vmatpush2.xpose.msra.mxu0 0.0
        %581 = vmatprep.subr.mxu0 0.0
        %582 = vmatpush2.xpose.msra.mxu0 0.0
        %583 = vmatprep.subr.mxu0 0.0
        %584 = vmatpush2.xpose.msra.mxu0 0.0
        %585 = vmatprep.subr.mxu0 0.0
        %586 = vmatpush2.xpose.msra.mxu0 0.0
        %587 = vmatprep.subr.mxu0 0.0
        %588 = vmatpush2.xpose.msra.mxu0 0.0
        %589 = vmatprep.subr.mxu0 0.0
        %590 = vmatpush2.xpose.msra.mxu0 0.0
        %591 = vmatprep.subr.mxu0 0.0
        %592 = vmatpush2.xpose.msra.mxu0 0.0
        %593 = vmatprep.subr.mxu0 0.0
        %594 = vmatpush2.xpose.msra.mxu0 0.0
        %595 = vmatprep.subr.mxu0 0.0
        %596 = vmatpush2.xpose.msra.mxu0 0.0
        %597 = vmatprep.subr.mxu0 0.0
        %598 = vmatpush2.xpose.msra.mxu0 0.0
        %599 = vmatprep.subr.mxu0 0.0
        %600 = vmatpush2.xpose.msra.mxu0 0.0
        %601 = vmatprep.subr.mxu0 0.0
        %602 = vmatpush2.xpose.msra.mxu0 0.0
        %603 = vmatprep.subr.mxu0 0.0
        %604 = vmatpush2.xpose.msra.mxu0 0.0
        %605 = vmatprep.subr.mxu0 0.0
        %606 = vmatpush2.xpose.msra.mxu0 0.0
        %607 = vmatprep.mubr.f32.mxu0 0.0
        %608 = vmatmul.mubr.f32.gmra.mxu0 %v538
        %v609 = vpop.f32.mrf.mxu0
        %v610 = vadd.f32 0.0, %v609
        %v611 = vpop.f32.mrf.mxu0
        %612 = vdwg.mxu0
        %vm613 = vcmask 64512
        %v614 = vsel %vm613, %v610, -inf
        %615 = vmax.xlane.f32.xlu0 %v614
        %v616 = vpop.xlane.xlu0 %615
        %v617 = vsub.f32 %v610, %v616
        %v618 = vmul.f32 %v617, 1.442695
        %v619 = vpow.pop %v618
        %v620 = vsel %vm613, %v619, 0.0
        %621 = vadd.xlane.f32.xlu0 %v620
        %v622 = vpop.xlane.xlu0 %621
        %v623 = vrcp.pop %v622
        %v624 = vmul.f32 %v619, %v623
        %v626 = vsel %vm613, %v624, 0
        %628 = vmatprep.subr.mxu0 0.0
        %629 = vmatpush1.msra.mxu0 0.0
        %630 = vmatprep.subr.mxu0 0.0
        %631 = vmatpush1.msra.mxu0 0.0
        %632 = vmatprep.subr.mxu0 0.0
        %633 = vmatpush1.msra.mxu0 0.0
        %634 = vmatprep.subr.mxu0 0.0
        %635 = vmatpush1.msra.mxu0 0.0
        %636 = vmatprep.subr.mxu0 0.0
        %637 = vmatpush1.msra.mxu0 0.0
        %638 = vmatprep.subr.mxu0 0.0
        %639 = vmatpush1.msra.mxu0 0.0
        %640 = vmatprep.subr.mxu0 0.0
        %641 = vmatpush1.msra.mxu0 0.0
        %642 = vmatprep.subr.mxu0 0.0
        %643 = vmatpush1.msra.mxu0 0.0
        %644 = vmatprep.subr.mxu0 0.0
        %645 = vmatpush1.msra.mxu0 0.0
        %646 = vmatprep.subr.mxu0 0.0
        %647 = vmatpush1.msra.mxu0 0.0
        %648 = vmatprep.subr.mxu0 0.0
        %649 = vmatpush1.msra.mxu0 0.0
        %650 = vmatprep.subr.mxu0 0.0
        %651 = vmatpush1.msra.mxu0 0.0
        %652 = vmatprep.subr.mxu0 0.0
        %653 = vmatpush1.msra.mxu0 0.0
        %654 = vmatprep.subr.mxu0 0.0
        %655 = vmatpush1.msra.mxu0 0.0
        %656 = vmatprep.subr.mxu0 0.0
        %657 = vmatpush1.msra.mxu0 0.0
        %658 = vmatprep.subr.mxu0 0.0
        %659 = vmatpush1.msra.mxu0 %v512
        %660 = vmatprep.subr.mxu0 0.0
        %661 = vmatpush2.msra.mxu0 0.0
        %662 = vmatprep.subr.mxu0 0.0
        %663 = vmatpush2.msra.mxu0 0.0
        %664 = vmatprep.subr.mxu0 0.0
        %665 = vmatpush2.msra.mxu0 0.0
        %666 = vmatprep.subr.mxu0 0.0
        %667 = vmatpush2.msra.mxu0 0.0
        %668 = vmatprep.subr.mxu0 0.0
        %669 = vmatpush2.msra.mxu0 0.0
        %670 = vmatprep.subr.mxu0 0.0
        %671 = vmatpush2.msra.mxu0 0.0
        %672 = vmatprep.subr.mxu0 0.0
        %673 = vmatpush2.msra.mxu0 0.0
        %674 = vmatprep.subr.mxu0 0.0
        %675 = vmatpush2.msra.mxu0 0.0
        %676 = vmatprep.subr.mxu0 0.0
        %677 = vmatpush2.msra.mxu0 0.0
        %678 = vmatprep.subr.mxu0 0.0
        %679 = vmatpush2.msra.mxu0 0.0
        %680 = vmatprep.subr.mxu0 0.0
        %681 = vmatpush2.msra.mxu0 0.0
        %682 = vmatprep.subr.mxu0 0.0
        %683 = vmatpush2.msra.mxu0 0.0
        %684 = vmatprep.subr.mxu0 0.0
        %685 = vmatpush2.msra.mxu0 0.0
        %686 = vmatprep.subr.mxu0 0.0
        %687 = vmatpush2.msra.mxu0 0.0
        %688 = vmatprep.subr.mxu0 0.0
        %689 = vmatpush2.msra.mxu0 0.0
        %690 = vmatprep.subr.mxu0 0.0
        %691 = vmatpush2.msra.mxu0 0.0
        %692 = vmatprep.mubr.f32.mxu0 0.0
        %693 = vmatmul.mubr.f32.gmra.mxu0 %v626
        %v694 = vpop.f32.mrf.mxu0
        %v695 = vadd.f32 0.0, %v694
        %v696 = vpop.f32.mrf.mxu0
        %697 = vdwg.mxu0
        %698 = vxpose.xlu0.b32.start [1/16] %v695, 128
        %699 = vxpose.xlu0.b32.cont [2/16] 0.0, 128
        %700 = vxpose.xlu0.b32.cont [3/16] 0.0, 128
        %701 = vxpose.xlu0.b32.cont [4/16] 0.0, 128
        %702 = vxpose.xlu0.b32.cont [5/16] 0.0, 128
        %703 = vxpose.xlu0.b32.cont [6/16] 0.0, 128
        %704 = vxpose.xlu0.b32.cont [7/16] 0.0, 128
        %705 = vxpose.xlu0.b32.cont [8/16] 0.0, 128
        %706 = vxpose.xlu0.b32.cont [9/16] 0.0, 128
        %707 = vxpose.xlu0.b32.cont [10/16] 0.0, 128
        %708 = vxpose.xlu0.b32.cont [11/16] 0.0, 128
        %709 = vxpose.xlu0.b32.cont [12/16] 0.0, 128
        %710 = vxpose.xlu0.b32.cont [13/16] 0.0, 128
        %711 = vxpose.xlu0.b32.cont [14/16] 0.0, 128
        %712 = vxpose.xlu0.b32.cont [15/16] 0.0, 128
        %713 = vxpose.xlu0.b32.end [16/16] 0.0, 128
        %v714 = vpop.trf.xlu0
        %v715 = vpop.trf.xlu0
        %v716 = vpop.trf.xlu0
        %v717 = vpop.trf.xlu0
        %v718 = vpop.trf.xlu0
        %v719 = vpop.trf.xlu0
        %v720 = vpop.trf.xlu0
        %v721 = vpop.trf.xlu0
        %v722 = vpop.trf.xlu0
        %v723 = vpop.trf.xlu0
        %v724 = vpop.trf.xlu0
        %v725 = vpop.trf.xlu0
        %v726 = vpop.trf.xlu0
        %v727 = vpop.trf.xlu0
        %v728 = vpop.trf.xlu0
        %v729 = vpop.trf.xlu0
        %s730 = smul.u32 %s25, 128
        %s731 = scalar_lea.vmem [#allocation7], %s730
        %v732 = vld [vmem:[%s731] sm:$0xff]
        %v733 = vld [vmem:[%s731 + $0x8] sm:$0xff]
        %v735 = vsel %vm613, %v715, 0
        %737 = vmatprep.subr.mxu0 0.0
        %738 = vmatpush1.msra.mxu0 0.0
        %739 = vmatprep.subr.mxu0 0.0
        %740 = vmatpush1.msra.mxu0 0.0
        %741 = vmatprep.subr.mxu0 0.0
        %742 = vmatpush1.msra.mxu0 0.0
        %743 = vmatprep.subr.mxu0 0.0
        %744 = vmatpush1.msra.mxu0 0.0
        %745 = vmatprep.subr.mxu0 0.0
        %746 = vmatpush1.msra.mxu0 0.0
        %747 = vmatprep.subr.mxu0 0.0
        %748 = vmatpush1.msra.mxu0 0.0
        %749 = vmatprep.subr.mxu0 0.0
        %750 = vmatpush1.msra.mxu0 0.0
        %751 = vmatprep.subr.mxu0 0.0
        %752 = vmatpush1.msra.mxu0 0.0
        %753 = vmatprep.subr.mxu0 0.0
        %754 = vmatpush1.msra.mxu0 0.0
        %755 = vmatprep.subr.mxu0 0.0
        %756 = vmatpush1.msra.mxu0 0.0
        %757 = vmatprep.subr.mxu0 0.0
        %758 = vmatpush1.msra.mxu0 0.0
        %759 = vmatprep.subr.mxu0 0.0
        %760 = vmatpush1.msra.mxu0 0.0
        %761 = vmatprep.subr.mxu0 0.0
        %762 = vmatpush1.msra.mxu0 0.0
        %763 = vmatprep.subr.mxu0 0.0
        %764 = vmatpush1.msra.mxu0 0.0
        %765 = vmatprep.subr.mxu0 0.0
        %766 = vmatpush1.msra.mxu0 0.0
        %767 = vmatprep.subr.mxu0 0.0
        %768 = vmatpush1.msra.mxu0 %v733
        %769 = vmatprep.subr.mxu0 0.0
        %770 = vmatpush2.msra.mxu0 0.0
        %771 = vmatprep.subr.mxu0 0.0
        %772 = vmatpush2.msra.mxu0 0.0
        %773 = vmatprep.subr.mxu0 0.0
        %774 = vmatpush2.msra.mxu0 0.0
        %775 = vmatprep.subr.mxu0 0.0
        %776 = vmatpush2.msra.mxu0 0.0
        %777 = vmatprep.subr.mxu0 0.0
        %778 = vmatpush2.msra.mxu0 0.0
        %779 = vmatprep.subr.mxu0 0.0
        %780 = vmatpush2.msra.mxu0 0.0
        %781 = vmatprep.subr.mxu0 0.0
        %782 = vmatpush2.msra.mxu0 0.0
        %783 = vmatprep.subr.mxu0 0.0
        %784 = vmatpush2.msra.mxu0 0.0
        %785 = vmatprep.subr.mxu0 0.0
        %786 = vmatpush2.msra.mxu0 0.0
        %787 = vmatprep.subr.mxu0 0.0
        %788 = vmatpush2.msra.mxu0 0.0
        %789 = vmatprep.subr.mxu0 0.0
        %790 = vmatpush2.msra.mxu0 0.0
        %791 = vmatprep.subr.mxu0 0.0
        %792 = vmatpush2.msra.mxu0 0.0
        %793 = vmatprep.subr.mxu0 0.0
        %794 = vmatpush2.msra.mxu0 0.0
        %795 = vmatprep.subr.mxu0 0.0
        %796 = vmatpush2.msra.mxu0 0.0
        %797 = vmatprep.subr.mxu0 0.0
        %798 = vmatpush2.msra.mxu0 0.0
        %799 = vmatprep.subr.mxu0 0.0
        %800 = vmatpush2.msra.mxu0 0.0
        %801 = vmatprep.mubr.f32.mxu0 0.0
        %802 = vmatmul.mubr.f32.gmra.mxu0 %v735
        %v803 = vpop.f32.mrf.mxu0
        %v804 = vadd.f32 0.0, %v803
        %v805 = vpop.f32.mrf.mxu0
        %806 = vdwg.mxu0
        %v808 = vsel %vm613, %v714, 0
        %810 = vmatprep.subr.mxu0 0.0
        %811 = vmatpush1.msra.mxu0 0.0
        %812 = vmatprep.subr.mxu0 0.0
        %813 = vmatpush1.msra.mxu0 0.0
        %814 = vmatprep.subr.mxu0 0.0
        %815 = vmatpush1.msra.mxu0 0.0
        %816 = vmatprep.subr.mxu0 0.0
        %817 = vmatpush1.msra.mxu0 0.0
        %818 = vmatprep.subr.mxu0 0.0
        %819 = vmatpush1.msra.mxu0 0.0
        %820 = vmatprep.subr.mxu0 0.0
        %821 = vmatpush1.msra.mxu0 0.0
        %822 = vmatprep.subr.mxu0 0.0
        %823 = vmatpush1.msra.mxu0 0.0
        %824 = vmatprep.subr.mxu0 0.0
        %825 = vmatpush1.msra.mxu0 0.0
        %826 = vmatprep.subr.mxu0 0.0
        %827 = vmatpush1.msra.mxu0 0.0
        %828 = vmatprep.subr.mxu0 0.0
        %829 = vmatpush1.msra.mxu0 0.0
        %830 = vmatprep.subr.mxu0 0.0
        %831 = vmatpush1.msra.mxu0 0.0
        %832 = vmatprep.subr.mxu0 0.0
        %833 = vmatpush1.msra.mxu0 0.0
        %834 = vmatprep.subr.mxu0 0.0
        %835 = vmatpush1.msra.mxu0 0.0
        %836 = vmatprep.subr.mxu0 0.0
        %837 = vmatpush1.msra.mxu0 0.0
        %838 = vmatprep.subr.mxu0 0.0
        %839 = vmatpush1.msra.mxu0 0.0
        %840 = vmatprep.subr.mxu0 0.0
        %841 = vmatpush1.msra.mxu0 %v732
        %842 = vmatprep.subr.mxu0 0.0
        %843 = vmatpush2.msra.mxu0 0.0
        %844 = vmatprep.subr.mxu0 0.0
        %845 = vmatpush2.msra.mxu0 0.0
        %846 = vmatprep.subr.mxu0 0.0
        %847 = vmatpush2.msra.mxu0 0.0
        %848 = vmatprep.subr.mxu0 0.0
        %849 = vmatpush2.msra.mxu0 0.0
        %850 = vmatprep.subr.mxu0 0.0
        %851 = vmatpush2.msra.mxu0 0.0
        %852 = vmatprep.subr.mxu0 0.0
        %853 = vmatpush2.msra.mxu0 0.0
        %854 = vmatprep.subr.mxu0 0.0
        %855 = vmatpush2.msra.mxu0 0.0
        %856 = vmatprep.subr.mxu0 0.0
        %857 = vmatpush2.msra.mxu0 0.0
        %858 = vmatprep.subr.mxu0 0.0
        %859 = vmatpush2.msra.mxu0 0.0
        %860 = vmatprep.subr.mxu0 0.0
        %861 = vmatpush2.msra.mxu0 0.0
        %862 = vmatprep.subr.mxu0 0.0
        %863 = vmatpush2.msra.mxu0 0.0
        %864 = vmatprep.subr.mxu0 0.0
        %865 = vmatpush2.msra.mxu0 0.0
        %866 = vmatprep.subr.mxu0 0.0
        %867 = vmatpush2.msra.mxu0 0.0
        %868 = vmatprep.subr.mxu0 0.0
        %869 = vmatpush2.msra.mxu0 0.0
        %870 = vmatprep.subr.mxu0 0.0
        %871 = vmatpush2.msra.mxu0 0.0
        %872 = vmatprep.subr.mxu0 0.0
        %873 = vmatpush2.msra.mxu0 0.0
        %874 = vmatprep.mubr.f32.mxu0 0.0
        %875 = vmatmul.mubr.f32.gmra.mxu0 %v808
        %v876 = vpop.f32.mrf.mxu0
        %v877 = vadd.f32 %v804, %v876
        %v878 = vpop.f32.mrf.mxu0
        %879 = vdwg.mxu0
        %v880 = vld [vmem:[%s731 + $0x10] sm:$0xff]
        %v882 = vsel %vm613, %v716, 0
        %884 = vmatprep.subr.mxu0 0.0
        %885 = vmatpush1.msra.mxu0 0.0
        %886 = vmatprep.subr.mxu0 0.0
        %887 = vmatpush1.msra.mxu0 0.0
        %888 = vmatprep.subr.mxu0 0.0
        %889 = vmatpush1.msra.mxu0 0.0
        %890 = vmatprep.subr.mxu0 0.0
        %891 = vmatpush1.msra.mxu0 0.0
        %892 = vmatprep.subr.mxu0 0.0
        %893 = vmatpush1.msra.mxu0 0.0
        %894 = vmatprep.subr.mxu0 0.0
        %895 = vmatpush1.msra.mxu0 0.0
        %896 = vmatprep.subr.mxu0 0.0
        %897 = vmatpush1.msra.mxu0 0.0
        %898 = vmatprep.subr.mxu0 0.0
        %899 = vmatpush1.msra.mxu0 0.0
        %900 = vmatprep.subr.mxu0 0.0
        %901 = vmatpush1.msra.mxu0 0.0
        %902 = vmatprep.subr.mxu0 0.0
        %903 = vmatpush1.msra.mxu0 0.0
        %904 = vmatprep.subr.mxu0 0.0
        %905 = vmatpush1.msra.mxu0 0.0
        %906 = vmatprep.subr.mxu0 0.0
        %907 = vmatpush1.msra.mxu0 0.0
        %908 = vmatprep.subr.mxu0 0.0
        %909 = vmatpush1.msra.mxu0 0.0
        %910 = vmatprep.subr.mxu0 0.0
        %911 = vmatpush1.msra.mxu0 0.0
        %912 = vmatprep.subr.mxu0 0.0
        %913 = vmatpush1.msra.mxu0 0.0
        %914 = vmatprep.subr.mxu0 0.0
        %915 = vmatpush1.msra.mxu0 %v880
        %916 = vmatprep.subr.mxu0 0.0
        %917 = vmatpush2.msra.mxu0 0.0
        %918 = vmatprep.subr.mxu0 0.0
        %919 = vmatpush2.msra.mxu0 0.0
        %920 = vmatprep.subr.mxu0 0.0
        %921 = vmatpush2.msra.mxu0 0.0
        %922 = vmatprep.subr.mxu0 0.0
        %923 = vmatpush2.msra.mxu0 0.0
        %924 = vmatprep.subr.mxu0 0.0
        %925 = vmatpush2.msra.mxu0 0.0
        %926 = vmatprep.subr.mxu0 0.0
        %927 = vmatpush2.msra.mxu0 0.0
        %928 = vmatprep.subr.mxu0 0.0
        %929 = vmatpush2.msra.mxu0 0.0
        %930 = vmatprep.subr.mxu0 0.0
        %931 = vmatpush2.msra.mxu0 0.0
        %932 = vmatprep.subr.mxu0 0.0
        %933 = vmatpush2.msra.mxu0 0.0
        %934 = vmatprep.subr.mxu0 0.0
        %935 = vmatpush2.msra.mxu0 0.0
        %936 = vmatprep.subr.mxu0 0.0
        %937 = vmatpush2.msra.mxu0 0.0
        %938 = vmatprep.subr.mxu0 0.0
        %939 = vmatpush2.msra.mxu0 0.0
        %940 = vmatprep.subr.mxu0 0.0
        %941 = vmatpush2.msra.mxu0 0.0
        %942 = vmatprep.subr.mxu0 0.0
        %943 = vmatpush2.msra.mxu0 0.0
        %944 = vmatprep.subr.mxu0 0.0
        %945 = vmatpush2.msra.mxu0 0.0
        %946 = vmatprep.subr.mxu0 0.0
        %947 = vmatpush2.msra.mxu0 0.0
        %948 = vmatprep.mubr.f32.mxu0 0.0
        %949 = vmatmul.mubr.f32.gmra.mxu0 %v882
        %v950 = vpop.f32.mrf.mxu0
        %v951 = vadd.f32 0.0, %v950
        %v952 = vpop.f32.mrf.mxu0
        %953 = vdwg.mxu0
        %v954 = vadd.f32 %v877, %v951
        %v955 = vld [vmem:[%s731 + $0x18] sm:$0xff]
        %v957 = vsel %vm613, %v717, 0
        %959 = vmatprep.subr.mxu0 0.0
        %960 = vmatpush1.msra.mxu0 0.0
        %961 = vmatprep.subr.mxu0 0.0
        %962 = vmatpush1.msra.mxu0 0.0
        %963 = vmatprep.subr.mxu0 0.0
        %964 = vmatpush1.msra.mxu0 0.0
        %965 = vmatprep.subr.mxu0 0.0
        %966 = vmatpush1.msra.mxu0 0.0
        %967 = vmatprep.subr.mxu0 0.0
        %968 = vmatpush1.msra.mxu0 0.0
        %969 = vmatprep.subr.mxu0 0.0
        %970 = vmatpush1.msra.mxu0 0.0
        %971 = vmatprep.subr.mxu0 0.0
        %972 = vmatpush1.msra.mxu0 0.0
        %973 = vmatprep.subr.mxu0 0.0
        %974 = vmatpush1.msra.mxu0 0.0
        %975 = vmatprep.subr.mxu0 0.0
        %976 = vmatpush1.msra.mxu0 0.0
        %977 = vmatprep.subr.mxu0 0.0
        %978 = vmatpush1.msra.mxu0 0.0
        %979 = vmatprep.subr.mxu0 0.0
        %980 = vmatpush1.msra.mxu0 0.0
        %981 = vmatprep.subr.mxu0 0.0
        %982 = vmatpush1.msra.mxu0 0.0
        %983 = vmatprep.subr.mxu0 0.0
        %984 = vmatpush1.msra.mxu0 0.0
        %985 = vmatprep.subr.mxu0 0.0
        %986 = vmatpush1.msra.mxu0 0.0
        %987 = vmatprep.subr.mxu0 0.0
        %988 = vmatpush1.msra.mxu0 0.0
        %989 = vmatprep.subr.mxu0 0.0
        %990 = vmatpush1.msra.mxu0 %v955
        %991 = vmatprep.subr.mxu0 0.0
        %992 = vmatpush2.msra.mxu0 0.0
        %993 = vmatprep.subr.mxu0 0.0
        %994 = vmatpush2.msra.mxu0 0.0
        %995 = vmatprep.subr.mxu0 0.0
        %996 = vmatpush2.msra.mxu0 0.0
        %997 = vmatprep.subr.mxu0 0.0
        %998 = vmatpush2.msra.mxu0 0.0
        %999 = vmatprep.subr.mxu0 0.0
        %1000 = vmatpush2.msra.mxu0 0.0
        %1001 = vmatprep.subr.mxu0 0.0
        %1002 = vmatpush2.msra.mxu0 0.0
        %1003 = vmatprep.subr.mxu0 0.0
        %1004 = vmatpush2.msra.mxu0 0.0
        %1005 = vmatprep.subr.mxu0 0.0
        %1006 = vmatpush2.msra.mxu0 0.0
        %1007 = vmatprep.subr.mxu0 0.0
        %1008 = vmatpush2.msra.mxu0 0.0
        %1009 = vmatprep.subr.mxu0 0.0
        %1010 = vmatpush2.msra.mxu0 0.0
        %1011 = vmatprep.subr.mxu0 0.0
        %1012 = vmatpush2.msra.mxu0 0.0
        %1013 = vmatprep.subr.mxu0 0.0
        %1014 = vmatpush2.msra.mxu0 0.0
        %1015 = vmatprep.subr.mxu0 0.0
        %1016 = vmatpush2.msra.mxu0 0.0
        %1017 = vmatprep.subr.mxu0 0.0
        %1018 = vmatpush2.msra.mxu0 0.0
        %1019 = vmatprep.subr.mxu0 0.0
        %1020 = vmatpush2.msra.mxu0 0.0
        %1021 = vmatprep.subr.mxu0 0.0
        %1022 = vmatpush2.msra.mxu0 0.0
        %1023 = vmatprep.mubr.f32.mxu0 0.0
        %1024 = vmatmul.mubr.f32.gmra.mxu0 %v957
        %v1025 = vpop.f32.mrf.mxu0
        %v1026 = vadd.f32 0.0, %v1025
        %v1027 = vpop.f32.mrf.mxu0
        %1028 = vdwg.mxu0
        %v1029 = vadd.f32 %v954, %v1026
        %v1030 = vld [vmem:[%s731 + $0x20] sm:$0xff]
        %v1032 = vsel %vm613, %v718, 0
        %1034 = vmatprep.subr.mxu0 0.0
        %1035 = vmatpush1.msra.mxu0 0.0
        %1036 = vmatprep.subr.mxu0 0.0
        %1037 = vmatpush1.msra.mxu0 0.0
        %1038 = vmatprep.subr.mxu0 0.0
        %1039 = vmatpush1.msra.mxu0 0.0
        %1040 = vmatprep.subr.mxu0 0.0
        %1041 = vmatpush1.msra.mxu0 0.0
        %1042 = vmatprep.subr.mxu0 0.0
        %1043 = vmatpush1.msra.mxu0 0.0
        %1044 = vmatprep.subr.mxu0 0.0
        %1045 = vmatpush1.msra.mxu0 0.0
        %1046 = vmatprep.subr.mxu0 0.0
        %1047 = vmatpush1.msra.mxu0 0.0
        %1048 = vmatprep.subr.mxu0 0.0
        %1049 = vmatpush1.msra.mxu0 0.0
        %1050 = vmatprep.subr.mxu0 0.0
        %1051 = vmatpush1.msra.mxu0 0.0
        %1052 = vmatprep.subr.mxu0 0.0
        %1053 = vmatpush1.msra.mxu0 0.0
        %1054 = vmatprep.subr.mxu0 0.0
        %1055 = vmatpush1.msra.mxu0 0.0
        %1056 = vmatprep.subr.mxu0 0.0
        %1057 = vmatpush1.msra.mxu0 0.0
        %1058 = vmatprep.subr.mxu0 0.0
        %1059 = vmatpush1.msra.mxu0 0.0
        %1060 = vmatprep.subr.mxu0 0.0
        %1061 = vmatpush1.msra.mxu0 0.0
        %1062 = vmatprep.subr.mxu0 0.0
        %1063 = vmatpush1.msra.mxu0 0.0
        %1064 = vmatprep.subr.mxu0 0.0
        %1065 = vmatpush1.msra.mxu0 %v1030
        %1066 = vmatprep.subr.mxu0 0.0
        %1067 = vmatpush2.msra.mxu0 0.0
        %1068 = vmatprep.subr.mxu0 0.0
        %1069 = vmatpush2.msra.mxu0 0.0
        %1070 = vmatprep.subr.mxu0 0.0
        %1071 = vmatpush2.msra.mxu0 0.0
        %1072 = vmatprep.subr.mxu0 0.0
        %1073 = vmatpush2.msra.mxu0 0.0
        %1074 = vmatprep.subr.mxu0 0.0
        %1075 = vmatpush2.msra.mxu0 0.0
        %1076 = vmatprep.subr.mxu0 0.0
        %1077 = vmatpush2.msra.mxu0 0.0
        %1078 = vmatprep.subr.mxu0 0.0
        %1079 = vmatpush2.msra.mxu0 0.0
        %1080 = vmatprep.subr.mxu0 0.0
        %1081 = vmatpush2.msra.mxu0 0.0
        %1082 = vmatprep.subr.mxu0 0.0
        %1083 = vmatpush2.msra.mxu0 0.0
        %1084 = vmatprep.subr.mxu0 0.0
        %1085 = vmatpush2.msra.mxu0 0.0
        %1086 = vmatprep.subr.mxu0 0.0
        %1087 = vmatpush2.msra.mxu0 0.0
        %1088 = vmatprep.subr.mxu0 0.0
        %1089 = vmatpush2.msra.mxu0 0.0
        %1090 = vmatprep.subr.mxu0 0.0
        %1091 = vmatpush2.msra.mxu0 0.0
        %1092 = vmatprep.subr.mxu0 0.0
        %1093 = vmatpush2.msra.mxu0 0.0
        %1094 = vmatprep.subr.mxu0 0.0
        %1095 = vmatpush2.msra.mxu0 0.0
        %1096 = vmatprep.subr.mxu0 0.0
        %1097 = vmatpush2.msra.mxu0 0.0
        %1098 = vmatprep.mubr.f32.mxu0 0.0
        %1099 = vmatmul.mubr.f32.gmra.mxu0 %v1032
        %v1100 = vpop.f32.mrf.mxu0
        %v1101 = vadd.f32 0.0, %v1100
        %v1102 = vpop.f32.mrf.mxu0
        %1103 = vdwg.mxu0
        %v1104 = vadd.f32 %v1029, %v1101
        %v1105 = vld [vmem:[%s731 + $0x28] sm:$0xff]
        %v1107 = vsel %vm613, %v719, 0
        %1109 = vmatprep.subr.mxu0 0.0
        %1110 = vmatpush1.msra.mxu0 0.0
        %1111 = vmatprep.subr.mxu0 0.0
        %1112 = vmatpush1.msra.mxu0 0.0
        %1113 = vmatprep.subr.mxu0 0.0
        %1114 = vmatpush1.msra.mxu0 0.0
        %1115 = vmatprep.subr.mxu0 0.0
        %1116 = vmatpush1.msra.mxu0 0.0
        %1117 = vmatprep.subr.mxu0 0.0
        %1118 = vmatpush1.msra.mxu0 0.0
        %1119 = vmatprep.subr.mxu0 0.0
        %1120 = vmatpush1.msra.mxu0 0.0
        %1121 = vmatprep.subr.mxu0 0.0
        %1122 = vmatpush1.msra.mxu0 0.0
        %1123 = vmatprep.subr.mxu0 0.0
        %1124 = vmatpush1.msra.mxu0 0.0
        %1125 = vmatprep.subr.mxu0 0.0
        %1126 = vmatpush1.msra.mxu0 0.0
        %1127 = vmatprep.subr.mxu0 0.0
        %1128 = vmatpush1.msra.mxu0 0.0
        %1129 = vmatprep.subr.mxu0 0.0
        %1130 = vmatpush1.msra.mxu0 0.0
        %1131 = vmatprep.subr.mxu0 0.0
        %1132 = vmatpush1.msra.mxu0 0.0
        %1133 = vmatprep.subr.mxu0 0.0
        %1134 = vmatpush1.msra.mxu0 0.0
        %1135 = vmatprep.subr.mxu0 0.0
        %1136 = vmatpush1.msra.mxu0 0.0
        %1137 = vmatprep.subr.mxu0 0.0
        %1138 = vmatpush1.msra.mxu0 0.0
        %1139 = vmatprep.subr.mxu0 0.0
        %1140 = vmatpush1.msra.mxu0 %v1105
        %1141 = vmatprep.subr.mxu0 0.0
        %1142 = vmatpush2.msra.mxu0 0.0
        %1143 = vmatprep.subr.mxu0 0.0
        %1144 = vmatpush2.msra.mxu0 0.0
        %1145 = vmatprep.subr.mxu0 0.0
        %1146 = vmatpush2.msra.mxu0 0.0
        %1147 = vmatprep.subr.mxu0 0.0
        %1148 = vmatpush2.msra.mxu0 0.0
        %1149 = vmatprep.subr.mxu0 0.0
        %1150 = vmatpush2.msra.mxu0 0.0
        %1151 = vmatprep.subr.mxu0 0.0
        %1152 = vmatpush2.msra.mxu0 0.0
        %1153 = vmatprep.subr.mxu0 0.0
        %1154 = vmatpush2.msra.mxu0 0.0
        %1155 = vmatprep.subr.mxu0 0.0
        %1156 = vmatpush2.msra.mxu0 0.0
        %1157 = vmatprep.subr.mxu0 0.0
        %1158 = vmatpush2.msra.mxu0 0.0
        %1159 = vmatprep.subr.mxu0 0.0
        %1160 = vmatpush2.msra.mxu0 0.0
        %1161 = vmatprep.subr.mxu0 0.0
        %1162 = vmatpush2.msra.mxu0 0.0
        %1163 = vmatprep.subr.mxu0 0.0
        %1164 = vmatpush2.msra.mxu0 0.0
        %1165 = vmatprep.subr.mxu0 0.0
        %1166 = vmatpush2.msra.mxu0 0.0
        %1167 = vmatprep.subr.mxu0 0.0
        %1168 = vmatpush2.msra.mxu0 0.0
        %1169 = vmatprep.subr.mxu0 0.0
        %1170 = vmatpush2.msra.mxu0 0.0
        %1171 = vmatprep.subr.mxu0 0.0
        %1172 = vmatpush2.msra.mxu0 0.0
        %1173 = vmatprep.mubr.f32.mxu0 0.0
        %1174 = vmatmul.mubr.f32.gmra.mxu0 %v1107
        %v1175 = vpop.f32.mrf.mxu0
        %v1176 = vadd.f32 0.0, %v1175
        %v1177 = vpop.f32.mrf.mxu0
        %1178 = vdwg.mxu0
        %v1179 = vadd.f32 %v1104, %v1176
        %v1180 = vld [vmem:[%s731 + $0x30] sm:$0xff]
        %v1182 = vsel %vm613, %v720, 0
        %1184 = vmatprep.subr.mxu0 0.0
        %1185 = vmatpush1.msra.mxu0 0.0
        %1186 = vmatprep.subr.mxu0 0.0
        %1187 = vmatpush1.msra.mxu0 0.0
        %1188 = vmatprep.subr.mxu0 0.0
        %1189 = vmatpush1.msra.mxu0 0.0
        %1190 = vmatprep.subr.mxu0 0.0
        %1191 = vmatpush1.msra.mxu0 0.0
        %1192 = vmatprep.subr.mxu0 0.0
        %1193 = vmatpush1.msra.mxu0 0.0
        %1194 = vmatprep.subr.mxu0 0.0
        %1195 = vmatpush1.msra.mxu0 0.0
        %1196 = vmatprep.subr.mxu0 0.0
        %1197 = vmatpush1.msra.mxu0 0.0
        %1198 = vmatprep.subr.mxu0 0.0
        %1199 = vmatpush1.msra.mxu0 0.0
        %1200 = vmatprep.subr.mxu0 0.0
        %1201 = vmatpush1.msra.mxu0 0.0
        %1202 = vmatprep.subr.mxu0 0.0
        %1203 = vmatpush1.msra.mxu0 0.0
        %1204 = vmatprep.subr.mxu0 0.0
        %1205 = vmatpush1.msra.mxu0 0.0
        %1206 = vmatprep.subr.mxu0 0.0
        %1207 = vmatpush1.msra.mxu0 0.0
        %1208 = vmatprep.subr.mxu0 0.0
        %1209 = vmatpush1.msra.mxu0 0.0
        %1210 = vmatprep.subr.mxu0 0.0
        %1211 = vmatpush1.msra.mxu0 0.0
        %1212 = vmatprep.subr.mxu0 0.0
        %1213 = vmatpush1.msra.mxu0 0.0
        %1214 = vmatprep.subr.mxu0 0.0
        %1215 = vmatpush1.msra.mxu0 %v1180
        %1216 = vmatprep.subr.mxu0 0.0
        %1217 = vmatpush2.msra.mxu0 0.0
        %1218 = vmatprep.subr.mxu0 0.0
        %1219 = vmatpush2.msra.mxu0 0.0
        %1220 = vmatprep.subr.mxu0 0.0
        %1221 = vmatpush2.msra.mxu0 0.0
        %1222 = vmatprep.subr.mxu0 0.0
        %1223 = vmatpush2.msra.mxu0 0.0
        %1224 = vmatprep.subr.mxu0 0.0
        %1225 = vmatpush2.msra.mxu0 0.0
        %1226 = vmatprep.subr.mxu0 0.0
        %1227 = vmatpush2.msra.mxu0 0.0
        %1228 = vmatprep.subr.mxu0 0.0
        %1229 = vmatpush2.msra.mxu0 0.0
        %1230 = vmatprep.subr.mxu0 0.0
        %1231 = vmatpush2.msra.mxu0 0.0
        %1232 = vmatprep.subr.mxu0 0.0
        %1233 = vmatpush2.msra.mxu0 0.0
        %1234 = vmatprep.subr.mxu0 0.0
        %1235 = vmatpush2.msra.mxu0 0.0
        %1236 = vmatprep.subr.mxu0 0.0
        %1237 = vmatpush2.msra.mxu0 0.0
        %1238 = vmatprep.subr.mxu0 0.0
        %1239 = vmatpush2.msra.mxu0 0.0
        %1240 = vmatprep.subr.mxu0 0.0
        %1241 = vmatpush2.msra.mxu0 0.0
        %1242 = vmatprep.subr.mxu0 0.0
        %1243 = vmatpush2.msra.mxu0 0.0
        %1244 = vmatprep.subr.mxu0 0.0
        %1245 = vmatpush2.msra.mxu0 0.0
        %1246 = vmatprep.subr.mxu0 0.0
        %1247 = vmatpush2.msra.mxu0 0.0
        %1248 = vmatprep.mubr.f32.mxu0 0.0
        %1249 = vmatmul.mubr.f32.gmra.mxu0 %v1182
        %v1250 = vpop.f32.mrf.mxu0
        %v1251 = vadd.f32 0.0, %v1250
        %v1252 = vpop.f32.mrf.mxu0
        %1253 = vdwg.mxu0
        %v1254 = vadd.f32 %v1179, %v1251
        %v1255 = vld [vmem:[%s731 + $0x38] sm:$0xff]
        %v1257 = vsel %vm613, %v721, 0
        %1259 = vmatprep.subr.mxu0 0.0
        %1260 = vmatpush1.msra.mxu0 0.0
        %1261 = vmatprep.subr.mxu0 0.0
        %1262 = vmatpush1.msra.mxu0 0.0
        %1263 = vmatprep.subr.mxu0 0.0
        %1264 = vmatpush1.msra.mxu0 0.0
        %1265 = vmatprep.subr.mxu0 0.0
        %1266 = vmatpush1.msra.mxu0 0.0
        %1267 = vmatprep.subr.mxu0 0.0
        %1268 = vmatpush1.msra.mxu0 0.0
        %1269 = vmatprep.subr.mxu0 0.0
        %1270 = vmatpush1.msra.mxu0 0.0
        %1271 = vmatprep.subr.mxu0 0.0
        %1272 = vmatpush1.msra.mxu0 0.0
        %1273 = vmatprep.subr.mxu0 0.0
        %1274 = vmatpush1.msra.mxu0 0.0
        %1275 = vmatprep.subr.mxu0 0.0
        %1276 = vmatpush1.msra.mxu0 0.0
        %1277 = vmatprep.subr.mxu0 0.0
        %1278 = vmatpush1.msra.mxu0 0.0
        %1279 = vmatprep.subr.mxu0 0.0
        %1280 = vmatpush1.msra.mxu0 0.0
        %1281 = vmatprep.subr.mxu0 0.0
        %1282 = vmatpush1.msra.mxu0 0.0
        %1283 = vmatprep.subr.mxu0 0.0
        %1284 = vmatpush1.msra.mxu0 0.0
        %1285 = vmatprep.subr.mxu0 0.0
        %1286 = vmatpush1.msra.mxu0 0.0
        %1287 = vmatprep.subr.mxu0 0.0
        %1288 = vmatpush1.msra.mxu0 0.0
        %1289 = vmatprep.subr.mxu0 0.0
        %1290 = vmatpush1.msra.mxu0 %v1255
        %1291 = vmatprep.subr.mxu0 0.0
        %1292 = vmatpush2.msra.mxu0 0.0
        %1293 = vmatprep.subr.mxu0 0.0
        %1294 = vmatpush2.msra.mxu0 0.0
        %1295 = vmatprep.subr.mxu0 0.0
        %1296 = vmatpush2.msra.mxu0 0.0
        %1297 = vmatprep.subr.mxu0 0.0
        %1298 = vmatpush2.msra.mxu0 0.0
        %1299 = vmatprep.subr.mxu0 0.0
        %1300 = vmatpush2.msra.mxu0 0.0
        %1301 = vmatprep.subr.mxu0 0.0
        %1302 = vmatpush2.msra.mxu0 0.0
        %1303 = vmatprep.subr.mxu0 0.0
        %1304 = vmatpush2.msra.mxu0 0.0
        %1305 = vmatprep.subr.mxu0 0.0
        %1306 = vmatpush2.msra.mxu0 0.0
        %1307 = vmatprep.subr.mxu0 0.0
        %1308 = vmatpush2.msra.mxu0 0.0
        %1309 = vmatprep.subr.mxu0 0.0
        %1310 = vmatpush2.msra.mxu0 0.0
        %1311 = vmatprep.subr.mxu0 0.0
        %1312 = vmatpush2.msra.mxu0 0.0
        %1313 = vmatprep.subr.mxu0 0.0
        %1314 = vmatpush2.msra.mxu0 0.0
        %1315 = vmatprep.subr.mxu0 0.0
        %1316 = vmatpush2.msra.mxu0 0.0
        %1317 = vmatprep.subr.mxu0 0.0
        %1318 = vmatpush2.msra.mxu0 0.0
        %1319 = vmatprep.subr.mxu0 0.0
        %1320 = vmatpush2.msra.mxu0 0.0
        %1321 = vmatprep.subr.mxu0 0.0
        %1322 = vmatpush2.msra.mxu0 0.0
        %1323 = vmatprep.mubr.f32.mxu0 0.0
        %1324 = vmatmul.mubr.f32.gmra.mxu0 %v1257
        %v1325 = vpop.f32.mrf.mxu0
        %v1326 = vadd.f32 0.0, %v1325
        %v1327 = vpop.f32.mrf.mxu0
        %1328 = vdwg.mxu0
        %v1329 = vadd.f32 %v1254, %v1326
        %v1330 = vld [vmem:[%s731 + $0x40] sm:$0xff]
        %v1332 = vsel %vm613, %v722, 0
        %1334 = vmatprep.subr.mxu0 0.0
        %1335 = vmatpush1.msra.mxu0 0.0
        %1336 = vmatprep.subr.mxu0 0.0
        %1337 = vmatpush1.msra.mxu0 0.0
        %1338 = vmatprep.subr.mxu0 0.0
        %1339 = vmatpush1.msra.mxu0 0.0
        %1340 = vmatprep.subr.mxu0 0.0
        %1341 = vmatpush1.msra.mxu0 0.0
        %1342 = vmatprep.subr.mxu0 0.0
        %1343 = vmatpush1.msra.mxu0 0.0
        %1344 = vmatprep.subr.mxu0 0.0
        %1345 = vmatpush1.msra.mxu0 0.0
        %1346 = vmatprep.subr.mxu0 0.0
        %1347 = vmatpush1.msra.mxu0 0.0
        %1348 = vmatprep.subr.mxu0 0.0
        %1349 = vmatpush1.msra.mxu0 0.0
        %1350 = vmatprep.subr.mxu0 0.0
        %1351 = vmatpush1.msra.mxu0 0.0
        %1352 = vmatprep.subr.mxu0 0.0
        %1353 = vmatpush1.msra.mxu0 0.0
        %1354 = vmatprep.subr.mxu0 0.0
        %1355 = vmatpush1.msra.mxu0 0.0
        %1356 = vmatprep.subr.mxu0 0.0
        %1357 = vmatpush1.msra.mxu0 0.0
        %1358 = vmatprep.subr.mxu0 0.0
        %1359 = vmatpush1.msra.mxu0 0.0
        %1360 = vmatprep.subr.mxu0 0.0
        %1361 = vmatpush1.msra.mxu0 0.0
        %1362 = vmatprep.subr.mxu0 0.0
        %1363 = vmatpush1.msra.mxu0 0.0
        %1364 = vmatprep.subr.mxu0 0.0
        %1365 = vmatpush1.msra.mxu0 %v1330
        %1366 = vmatprep.subr.mxu0 0.0
        %1367 = vmatpush2.msra.mxu0 0.0
        %1368 = vmatprep.subr.mxu0 0.0
        %1369 = vmatpush2.msra.mxu0 0.0
        %1370 = vmatprep.subr.mxu0 0.0
        %1371 = vmatpush2.msra.mxu0 0.0
        %1372 = vmatprep.subr.mxu0 0.0
        %1373 = vmatpush2.msra.mxu0 0.0
        %1374 = vmatprep.subr.mxu0 0.0
        %1375 = vmatpush2.msra.mxu0 0.0
        %1376 = vmatprep.subr.mxu0 0.0
        %1377 = vmatpush2.msra.mxu0 0.0
        %1378 = vmatprep.subr.mxu0 0.0
        %1379 = vmatpush2.msra.mxu0 0.0
        %1380 = vmatprep.subr.mxu0 0.0
        %1381 = vmatpush2.msra.mxu0 0.0
        %1382 = vmatprep.subr.mxu0 0.0
        %1383 = vmatpush2.msra.mxu0 0.0
        %1384 = vmatprep.subr.mxu0 0.0
        %1385 = vmatpush2.msra.mxu0 0.0
        %1386 = vmatprep.subr.mxu0 0.0
        %1387 = vmatpush2.msra.mxu0 0.0
        %1388 = vmatprep.subr.mxu0 0.0
        %1389 = vmatpush2.msra.mxu0 0.0
        %1390 = vmatprep.subr.mxu0 0.0
        %1391 = vmatpush2.msra.mxu0 0.0
        %1392 = vmatprep.subr.mxu0 0.0
        %1393 = vmatpush2.msra.mxu0 0.0
        %1394 = vmatprep.subr.mxu0 0.0
        %1395 = vmatpush2.msra.mxu0 0.0
        %1396 = vmatprep.subr.mxu0 0.0
        %1397 = vmatpush2.msra.mxu0 0.0
        %1398 = vmatprep.mubr.f32.mxu0 0.0
        %1399 = vmatmul.mubr.f32.gmra.mxu0 %v1332
        %v1400 = vpop.f32.mrf.mxu0
        %v1401 = vadd.f32 0.0, %v1400
        %v1402 = vpop.f32.mrf.mxu0
        %1403 = vdwg.mxu0
        %v1404 = vadd.f32 %v1329, %v1401
        %v1405 = vld [vmem:[%s731 + $0x48] sm:$0xff]
        %v1407 = vsel %vm613, %v723, 0
        %1409 = vmatprep.subr.mxu0 0.0
        %1410 = vmatpush1.msra.mxu0 0.0
        %1411 = vmatprep.subr.mxu0 0.0
        %1412 = vmatpush1.msra.mxu0 0.0
        %1413 = vmatprep.subr.mxu0 0.0
        %1414 = vmatpush1.msra.mxu0 0.0
        %1415 = vmatprep.subr.mxu0 0.0
        %1416 = vmatpush1.msra.mxu0 0.0
        %1417 = vmatprep.subr.mxu0 0.0
        %1418 = vmatpush1.msra.mxu0 0.0
        %1419 = vmatprep.subr.mxu0 0.0
        %1420 = vmatpush1.msra.mxu0 0.0
        %1421 = vmatprep.subr.mxu0 0.0
        %1422 = vmatpush1.msra.mxu0 0.0
        %1423 = vmatprep.subr.mxu0 0.0
        %1424 = vmatpush1.msra.mxu0 0.0
        %1425 = vmatprep.subr.mxu0 0.0
        %1426 = vmatpush1.msra.mxu0 0.0
        %1427 = vmatprep.subr.mxu0 0.0
        %1428 = vmatpush1.msra.mxu0 0.0
        %1429 = vmatprep.subr.mxu0 0.0
        %1430 = vmatpush1.msra.mxu0 0.0
        %1431 = vmatprep.subr.mxu0 0.0
        %1432 = vmatpush1.msra.mxu0 0.0
        %1433 = vmatprep.subr.mxu0 0.0
        %1434 = vmatpush1.msra.mxu0 0.0
        %1435 = vmatprep.subr.mxu0 0.0
        %1436 = vmatpush1.msra.mxu0 0.0
        %1437 = vmatprep.subr.mxu0 0.0
        %1438 = vmatpush1.msra.mxu0 0.0
        %1439 = vmatprep.subr.mxu0 0.0
        %1440 = vmatpush1.msra.mxu0 %v1405
        %1441 = vmatprep.subr.mxu0 0.0
        %1442 = vmatpush2.msra.mxu0 0.0
        %1443 = vmatprep.subr.mxu0 0.0
        %1444 = vmatpush2.msra.mxu0 0.0
        %1445 = vmatprep.subr.mxu0 0.0
        %1446 = vmatpush2.msra.mxu0 0.0
        %1447 = vmatprep.subr.mxu0 0.0
        %1448 = vmatpush2.msra.mxu0 0.0
        %1449 = vmatprep.subr.mxu0 0.0
        %1450 = vmatpush2.msra.mxu0 0.0
        %1451 = vmatprep.subr.mxu0 0.0
        %1452 = vmatpush2.msra.mxu0 0.0
        %1453 = vmatprep.subr.mxu0 0.0
        %1454 = vmatpush2.msra.mxu0 0.0
        %1455 = vmatprep.subr.mxu0 0.0
        %1456 = vmatpush2.msra.mxu0 0.0
        %1457 = vmatprep.subr.mxu0 0.0
        %1458 = vmatpush2.msra.mxu0 0.0
        %1459 = vmatprep.subr.mxu0 0.0
        %1460 = vmatpush2.msra.mxu0 0.0
        %1461 = vmatprep.subr.mxu0 0.0
        %1462 = vmatpush2.msra.mxu0 0.0
        %1463 = vmatprep.subr.mxu0 0.0
        %1464 = vmatpush2.msra.mxu0 0.0
        %1465 = vmatprep.subr.mxu0 0.0
        %1466 = vmatpush2.msra.mxu0 0.0
        %1467 = vmatprep.subr.mxu0 0.0
        %1468 = vmatpush2.msra.mxu0 0.0
        %1469 = vmatprep.subr.mxu0 0.0
        %1470 = vmatpush2.msra.mxu0 0.0
        %1471 = vmatprep.subr.mxu0 0.0
        %1472 = vmatpush2.msra.mxu0 0.0
        %1473 = vmatprep.mubr.f32.mxu0 0.0
        %1474 = vmatmul.mubr.f32.gmra.mxu0 %v1407
        %v1475 = vpop.f32.mrf.mxu0
        %v1476 = vadd.f32 0.0, %v1475
        %v1477 = vpop.f32.mrf.mxu0
        %1478 = vdwg.mxu0
        %v1479 = vadd.f32 %v1404, %v1476
        %v1480 = vld [vmem:[%s731 + $0x50] sm:$0xff]
        %v1482 = vsel %vm613, %v724, 0
        %1484 = vmatprep.subr.mxu0 0.0
        %1485 = vmatpush1.msra.mxu0 0.0
        %1486 = vmatprep.subr.mxu0 0.0
        %1487 = vmatpush1.msra.mxu0 0.0
        %1488 = vmatprep.subr.mxu0 0.0
        %1489 = vmatpush1.msra.mxu0 0.0
        %1490 = vmatprep.subr.mxu0 0.0
        %1491 = vmatpush1.msra.mxu0 0.0
        %1492 = vmatprep.subr.mxu0 0.0
        %1493 = vmatpush1.msra.mxu0 0.0
        %1494 = vmatprep.subr.mxu0 0.0
        %1495 = vmatpush1.msra.mxu0 0.0
        %1496 = vmatprep.subr.mxu0 0.0
        %1497 = vmatpush1.msra.mxu0 0.0
        %1498 = vmatprep.subr.mxu0 0.0
        %1499 = vmatpush1.msra.mxu0 0.0
        %1500 = vmatprep.subr.mxu0 0.0
        %1501 = vmatpush1.msra.mxu0 0.0
        %1502 = vmatprep.subr.mxu0 0.0
        %1503 = vmatpush1.msra.mxu0 0.0
        %1504 = vmatprep.subr.mxu0 0.0
        %1505 = vmatpush1.msra.mxu0 0.0
        %1506 = vmatprep.subr.mxu0 0.0
        %1507 = vmatpush1.msra.mxu0 0.0
        %1508 = vmatprep.subr.mxu0 0.0
        %1509 = vmatpush1.msra.mxu0 0.0
        %1510 = vmatprep.subr.mxu0 0.0
        %1511 = vmatpush1.msra.mxu0 0.0
        %1512 = vmatprep.subr.mxu0 0.0
        %1513 = vmatpush1.msra.mxu0 0.0
        %1514 = vmatprep.subr.mxu0 0.0
        %1515 = vmatpush1.msra.mxu0 %v1480
        %1516 = vmatprep.subr.mxu0 0.0
        %1517 = vmatpush2.msra.mxu0 0.0
        %1518 = vmatprep.subr.mxu0 0.0
        %1519 = vmatpush2.msra.mxu0 0.0
        %1520 = vmatprep.subr.mxu0 0.0
        %1521 = vmatpush2.msra.mxu0 0.0
        %1522 = vmatprep.subr.mxu0 0.0
        %1523 = vmatpush2.msra.mxu0 0.0
        %1524 = vmatprep.subr.mxu0 0.0
        %1525 = vmatpush2.msra.mxu0 0.0
        %1526 = vmatprep.subr.mxu0 0.0
        %1527 = vmatpush2.msra.mxu0 0.0
        %1528 = vmatprep.subr.mxu0 0.0
        %1529 = vmatpush2.msra.mxu0 0.0
        %1530 = vmatprep.subr.mxu0 0.0
        %1531 = vmatpush2.msra.mxu0 0.0
        %1532 = vmatprep.subr.mxu0 0.0
        %1533 = vmatpush2.msra.mxu0 0.0
        %1534 = vmatprep.subr.mxu0 0.0
        %1535 = vmatpush2.msra.mxu0 0.0
        %1536 = vmatprep.subr.mxu0 0.0
        %1537 = vmatpush2.msra.mxu0 0.0
        %1538 = vmatprep.subr.mxu0 0.0
        %1539 = vmatpush2.msra.mxu0 0.0
        %1540 = vmatprep.subr.mxu0 0.0
        %1541 = vmatpush2.msra.mxu0 0.0
        %1542 = vmatprep.subr.mxu0 0.0
        %1543 = vmatpush2.msra.mxu0 0.0
        %1544 = vmatprep.subr.mxu0 0.0
        %1545 = vmatpush2.msra.mxu0 0.0
        %1546 = vmatprep.subr.mxu0 0.0
        %1547 = vmatpush2.msra.mxu0 0.0
        %1548 = vmatprep.mubr.f32.mxu0 0.0
        %1549 = vmatmul.mubr.f32.gmra.mxu0 %v1482
        %v1550 = vpop.f32.mrf.mxu0
        %v1551 = vadd.f32 0.0, %v1550
        %v1552 = vpop.f32.mrf.mxu0
        %1553 = vdwg.mxu0
        %v1554 = vadd.f32 %v1479, %v1551
        %v1555 = vld [vmem:[%s731 + $0x58] sm:$0xff]
        %v1557 = vsel %vm613, %v725, 0
        %1559 = vmatprep.subr.mxu0 0.0
        %1560 = vmatpush1.msra.mxu0 0.0
        %1561 = vmatprep.subr.mxu0 0.0
        %1562 = vmatpush1.msra.mxu0 0.0
        %1563 = vmatprep.subr.mxu0 0.0
        %1564 = vmatpush1.msra.mxu0 0.0
        %1565 = vmatprep.subr.mxu0 0.0
        %1566 = vmatpush1.msra.mxu0 0.0
        %1567 = vmatprep.subr.mxu0 0.0
        %1568 = vmatpush1.msra.mxu0 0.0
        %1569 = vmatprep.subr.mxu0 0.0
        %1570 = vmatpush1.msra.mxu0 0.0
        %1571 = vmatprep.subr.mxu0 0.0
        %1572 = vmatpush1.msra.mxu0 0.0
        %1573 = vmatprep.subr.mxu0 0.0
        %1574 = vmatpush1.msra.mxu0 0.0
        %1575 = vmatprep.subr.mxu0 0.0
        %1576 = vmatpush1.msra.mxu0 0.0
        %1577 = vmatprep.subr.mxu0 0.0
        %1578 = vmatpush1.msra.mxu0 0.0
        %1579 = vmatprep.subr.mxu0 0.0
        %1580 = vmatpush1.msra.mxu0 0.0
        %1581 = vmatprep.subr.mxu0 0.0
        %1582 = vmatpush1.msra.mxu0 0.0
        %1583 = vmatprep.subr.mxu0 0.0
        %1584 = vmatpush1.msra.mxu0 0.0
        %1585 = vmatprep.subr.mxu0 0.0
        %1586 = vmatpush1.msra.mxu0 0.0
        %1587 = vmatprep.subr.mxu0 0.0
        %1588 = vmatpush1.msra.mxu0 0.0
        %1589 = vmatprep.subr.mxu0 0.0
        %1590 = vmatpush1.msra.mxu0 %v1555
        %1591 = vmatprep.subr.mxu0 0.0
        %1592 = vmatpush2.msra.mxu0 0.0
        %1593 = vmatprep.subr.mxu0 0.0
        %1594 = vmatpush2.msra.mxu0 0.0
        %1595 = vmatprep.subr.mxu0 0.0
        %1596 = vmatpush2.msra.mxu0 0.0
        %1597 = vmatprep.subr.mxu0 0.0
        %1598 = vmatpush2.msra.mxu0 0.0
        %1599 = vmatprep.subr.mxu0 0.0
        %1600 = vmatpush2.msra.mxu0 0.0
        %1601 = vmatprep.subr.mxu0 0.0
        %1602 = vmatpush2.msra.mxu0 0.0
        %1603 = vmatprep.subr.mxu0 0.0
        %1604 = vmatpush2.msra.mxu0 0.0
        %1605 = vmatprep.subr.mxu0 0.0
        %1606 = vmatpush2.msra.mxu0 0.0
        %1607 = vmatprep.subr.mxu0 0.0
        %1608 = vmatpush2.msra.mxu0 0.0
        %1609 = vmatprep.subr.mxu0 0.0
        %1610 = vmatpush2.msra.mxu0 0.0
        %1611 = vmatprep.subr.mxu0 0.0
        %1612 = vmatpush2.msra.mxu0 0.0
        %1613 = vmatprep.subr.mxu0 0.0
        %1614 = vmatpush2.msra.mxu0 0.0
        %1615 = vmatprep.subr.mxu0 0.0
        %1616 = vmatpush2.msra.mxu0 0.0
        %1617 = vmatprep.subr.mxu0 0.0
        %1618 = vmatpush2.msra.mxu0 0.0
        %1619 = vmatprep.subr.mxu0 0.0
        %1620 = vmatpush2.msra.mxu0 0.0
        %1621 = vmatprep.subr.mxu0 0.0
        %1622 = vmatpush2.msra.mxu0 0.0
        %1623 = vmatprep.mubr.f32.mxu0 0.0
        %1624 = vmatmul.mubr.f32.gmra.mxu0 %v1557
        %v1625 = vpop.f32.mrf.mxu0
        %v1626 = vadd.f32 0.0, %v1625
        %v1627 = vpop.f32.mrf.mxu0
        %1628 = vdwg.mxu0
        %v1629 = vadd.f32 %v1554, %v1626
        %v1630 = vld [vmem:[%s731 + $0x60] sm:$0xff]
        %v1632 = vsel %vm613, %v726, 0
        %1634 = vmatprep.subr.mxu0 0.0
        %1635 = vmatpush1.msra.mxu0 0.0
        %1636 = vmatprep.subr.mxu0 0.0
        %1637 = vmatpush1.msra.mxu0 0.0
        %1638 = vmatprep.subr.mxu0 0.0
        %1639 = vmatpush1.msra.mxu0 0.0
        %1640 = vmatprep.subr.mxu0 0.0
        %1641 = vmatpush1.msra.mxu0 0.0
        %1642 = vmatprep.subr.mxu0 0.0
        %1643 = vmatpush1.msra.mxu0 0.0
        %1644 = vmatprep.subr.mxu0 0.0
        %1645 = vmatpush1.msra.mxu0 0.0
        %1646 = vmatprep.subr.mxu0 0.0
        %1647 = vmatpush1.msra.mxu0 0.0
        %1648 = vmatprep.subr.mxu0 0.0
        %1649 = vmatpush1.msra.mxu0 0.0
        %1650 = vmatprep.subr.mxu0 0.0
        %1651 = vmatpush1.msra.mxu0 0.0
        %1652 = vmatprep.subr.mxu0 0.0
        %1653 = vmatpush1.msra.mxu0 0.0
        %1654 = vmatprep.subr.mxu0 0.0
        %1655 = vmatpush1.msra.mxu0 0.0
        %1656 = vmatprep.subr.mxu0 0.0
        %1657 = vmatpush1.msra.mxu0 0.0
        %1658 = vmatprep.subr.mxu0 0.0
        %1659 = vmatpush1.msra.mxu0 0.0
        %1660 = vmatprep.subr.mxu0 0.0
        %1661 = vmatpush1.msra.mxu0 0.0
        %1662 = vmatprep.subr.mxu0 0.0
        %1663 = vmatpush1.msra.mxu0 0.0
        %1664 = vmatprep.subr.mxu0 0.0
        %1665 = vmatpush1.msra.mxu0 %v1630
        %1666 = vmatprep.subr.mxu0 0.0
        %1667 = vmatpush2.msra.mxu0 0.0
        %1668 = vmatprep.subr.mxu0 0.0
        %1669 = vmatpush2.msra.mxu0 0.0
        %1670 = vmatprep.subr.mxu0 0.0
        %1671 = vmatpush2.msra.mxu0 0.0
        %1672 = vmatprep.subr.mxu0 0.0
        %1673 = vmatpush2.msra.mxu0 0.0
        %1674 = vmatprep.subr.mxu0 0.0
        %1675 = vmatpush2.msra.mxu0 0.0
        %1676 = vmatprep.subr.mxu0 0.0
        %1677 = vmatpush2.msra.mxu0 0.0
        %1678 = vmatprep.subr.mxu0 0.0
        %1679 = vmatpush2.msra.mxu0 0.0
        %1680 = vmatprep.subr.mxu0 0.0
        %1681 = vmatpush2.msra.mxu0 0.0
        %1682 = vmatprep.subr.mxu0 0.0
        %1683 = vmatpush2.msra.mxu0 0.0
        %1684 = vmatprep.subr.mxu0 0.0
        %1685 = vmatpush2.msra.mxu0 0.0
        %1686 = vmatprep.subr.mxu0 0.0
        %1687 = vmatpush2.msra.mxu0 0.0
        %1688 = vmatprep.subr.mxu0 0.0
        %1689 = vmatpush2.msra.mxu0 0.0
        %1690 = vmatprep.subr.mxu0 0.0
        %1691 = vmatpush2.msra.mxu0 0.0
        %1692 = vmatprep.subr.mxu0 0.0
        %1693 = vmatpush2.msra.mxu0 0.0
        %1694 = vmatprep.subr.mxu0 0.0
        %1695 = vmatpush2.msra.mxu0 0.0
        %1696 = vmatprep.subr.mxu0 0.0
        %1697 = vmatpush2.msra.mxu0 0.0
        %1698 = vmatprep.mubr.f32.mxu0 0.0
        %1699 = vmatmul.mubr.f32.gmra.mxu0 %v1632
        %v1700 = vpop.f32.mrf.mxu0
        %v1701 = vadd.f32 0.0, %v1700
        %v1702 = vpop.f32.mrf.mxu0
        %1703 = vdwg.mxu0
        %v1704 = vadd.f32 %v1629, %v1701
        %v1705 = vld [vmem:[%s731 + $0x68] sm:$0xff]
        %v1707 = vsel %vm613, %v727, 0
        %1709 = vmatprep.subr.mxu0 0.0
        %1710 = vmatpush1.msra.mxu0 0.0
        %1711 = vmatprep.subr.mxu0 0.0
        %1712 = vmatpush1.msra.mxu0 0.0
        %1713 = vmatprep.subr.mxu0 0.0
        %1714 = vmatpush1.msra.mxu0 0.0
        %1715 = vmatprep.subr.mxu0 0.0
        %1716 = vmatpush1.msra.mxu0 0.0
        %1717 = vmatprep.subr.mxu0 0.0
        %1718 = vmatpush1.msra.mxu0 0.0
        %1719 = vmatprep.subr.mxu0 0.0
        %1720 = vmatpush1.msra.mxu0 0.0
        %1721 = vmatprep.subr.mxu0 0.0
        %1722 = vmatpush1.msra.mxu0 0.0
        %1723 = vmatprep.subr.mxu0 0.0
        %1724 = vmatpush1.msra.mxu0 0.0
        %1725 = vmatprep.subr.mxu0 0.0
        %1726 = vmatpush1.msra.mxu0 0.0
        %1727 = vmatprep.subr.mxu0 0.0
        %1728 = vmatpush1.msra.mxu0 0.0
        %1729 = vmatprep.subr.mxu0 0.0
        %1730 = vmatpush1.msra.mxu0 0.0
        %1731 = vmatprep.subr.mxu0 0.0
        %1732 = vmatpush1.msra.mxu0 0.0
        %1733 = vmatprep.subr.mxu0 0.0
        %1734 = vmatpush1.msra.mxu0 0.0
        %1735 = vmatprep.subr.mxu0 0.0
        %1736 = vmatpush1.msra.mxu0 0.0
        %1737 = vmatprep.subr.mxu0 0.0
        %1738 = vmatpush1.msra.mxu0 0.0
        %1739 = vmatprep.subr.mxu0 0.0
        %1740 = vmatpush1.msra.mxu0 %v1705
        %1741 = vmatprep.subr.mxu0 0.0
        %1742 = vmatpush2.msra.mxu0 0.0
        %1743 = vmatprep.subr.mxu0 0.0
        %1744 = vmatpush2.msra.mxu0 0.0
        %1745 = vmatprep.subr.mxu0 0.0
        %1746 = vmatpush2.msra.mxu0 0.0
        %1747 = vmatprep.subr.mxu0 0.0
        %1748 = vmatpush2.msra.mxu0 0.0
        %1749 = vmatprep.subr.mxu0 0.0
        %1750 = vmatpush2.msra.mxu0 0.0
        %1751 = vmatprep.subr.mxu0 0.0
        %1752 = vmatpush2.msra.mxu0 0.0
        %1753 = vmatprep.subr.mxu0 0.0
        %1754 = vmatpush2.msra.mxu0 0.0
        %1755 = vmatprep.subr.mxu0 0.0
        %1756 = vmatpush2.msra.mxu0 0.0
        %1757 = vmatprep.subr.mxu0 0.0
        %1758 = vmatpush2.msra.mxu0 0.0
        %1759 = vmatprep.subr.mxu0 0.0
        %1760 = vmatpush2.msra.mxu0 0.0
        %1761 = vmatprep.subr.mxu0 0.0
        %1762 = vmatpush2.msra.mxu0 0.0
        %1763 = vmatprep.subr.mxu0 0.0
        %1764 = vmatpush2.msra.mxu0 0.0
        %1765 = vmatprep.subr.mxu0 0.0
        %1766 = vmatpush2.msra.mxu0 0.0
        %1767 = vmatprep.subr.mxu0 0.0
        %1768 = vmatpush2.msra.mxu0 0.0
        %1769 = vmatprep.subr.mxu0 0.0
        %1770 = vmatpush2.msra.mxu0 0.0
        %1771 = vmatprep.subr.mxu0 0.0
        %1772 = vmatpush2.msra.mxu0 0.0
        %1773 = vmatprep.mubr.f32.mxu0 0.0
        %1774 = vmatmul.mubr.f32.gmra.mxu0 %v1707
        %v1775 = vpop.f32.mrf.mxu0
        %v1776 = vadd.f32 0.0, %v1775
        %v1777 = vpop.f32.mrf.mxu0
        %1778 = vdwg.mxu0
        %v1779 = vadd.f32 %v1704, %v1776
        %v1780 = vld [vmem:[%s731 + $0x70] sm:$0xff]
        %v1782 = vsel %vm613, %v728, 0
        %1784 = vmatprep.subr.mxu0 0.0
        %1785 = vmatpush1.msra.mxu0 0.0
        %1786 = vmatprep.subr.mxu0 0.0
        %1787 = vmatpush1.msra.mxu0 0.0
        %1788 = vmatprep.subr.mxu0 0.0
        %1789 = vmatpush1.msra.mxu0 0.0
        %1790 = vmatprep.subr.mxu0 0.0
        %1791 = vmatpush1.msra.mxu0 0.0
        %1792 = vmatprep.subr.mxu0 0.0
        %1793 = vmatpush1.msra.mxu0 0.0
        %1794 = vmatprep.subr.mxu0 0.0
        %1795 = vmatpush1.msra.mxu0 0.0
        %1796 = vmatprep.subr.mxu0 0.0
        %1797 = vmatpush1.msra.mxu0 0.0
        %1798 = vmatprep.subr.mxu0 0.0
        %1799 = vmatpush1.msra.mxu0 0.0
        %1800 = vmatprep.subr.mxu0 0.0
        %1801 = vmatpush1.msra.mxu0 0.0
        %1802 = vmatprep.subr.mxu0 0.0
        %1803 = vmatpush1.msra.mxu0 0.0
        %1804 = vmatprep.subr.mxu0 0.0
        %1805 = vmatpush1.msra.mxu0 0.0
        %1806 = vmatprep.subr.mxu0 0.0
        %1807 = vmatpush1.msra.mxu0 0.0
        %1808 = vmatprep.subr.mxu0 0.0
        %1809 = vmatpush1.msra.mxu0 0.0
        %1810 = vmatprep.subr.mxu0 0.0
        %1811 = vmatpush1.msra.mxu0 0.0
        %1812 = vmatprep.subr.mxu0 0.0
        %1813 = vmatpush1.msra.mxu0 0.0
        %1814 = vmatprep.subr.mxu0 0.0
        %1815 = vmatpush1.msra.mxu0 %v1780
        %1816 = vmatprep.subr.mxu0 0.0
        %1817 = vmatpush2.msra.mxu0 0.0
        %1818 = vmatprep.subr.mxu0 0.0
        %1819 = vmatpush2.msra.mxu0 0.0
        %1820 = vmatprep.subr.mxu0 0.0
        %1821 = vmatpush2.msra.mxu0 0.0
        %1822 = vmatprep.subr.mxu0 0.0
        %1823 = vmatpush2.msra.mxu0 0.0
        %1824 = vmatprep.subr.mxu0 0.0
        %1825 = vmatpush2.msra.mxu0 0.0
        %1826 = vmatprep.subr.mxu0 0.0
        %1827 = vmatpush2.msra.mxu0 0.0
        %1828 = vmatprep.subr.mxu0 0.0
        %1829 = vmatpush2.msra.mxu0 0.0
        %1830 = vmatprep.subr.mxu0 0.0
        %1831 = vmatpush2.msra.mxu0 0.0
        %1832 = vmatprep.subr.mxu0 0.0
        %1833 = vmatpush2.msra.mxu0 0.0
        %1834 = vmatprep.subr.mxu0 0.0
        %1835 = vmatpush2.msra.mxu0 0.0
        %1836 = vmatprep.subr.mxu0 0.0
        %1837 = vmatpush2.msra.mxu0 0.0
        %1838 = vmatprep.subr.mxu0 0.0
        %1839 = vmatpush2.msra.mxu0 0.0
        %1840 = vmatprep.subr.mxu0 0.0
        %1841 = vmatpush2.msra.mxu0 0.0
        %1842 = vmatprep.subr.mxu0 0.0
        %1843 = vmatpush2.msra.mxu0 0.0
        %1844 = vmatprep.subr.mxu0 0.0
        %1845 = vmatpush2.msra.mxu0 0.0
        %1846 = vmatprep.subr.mxu0 0.0
        %1847 = vmatpush2.msra.mxu0 0.0
        %1848 = vmatprep.mubr.f32.mxu0 0.0
        %1849 = vmatmul.mubr.f32.gmra.mxu0 %v1782
        %v1850 = vpop.f32.mrf.mxu0
        %v1851 = vadd.f32 0.0, %v1850
        %v1852 = vpop.f32.mrf.mxu0
        %1853 = vdwg.mxu0
        %v1854 = vadd.f32 %v1779, %v1851
        %v1855 = vld [vmem:[%s731 + $0x78] sm:$0xff]
        %v1857 = vsel %vm613, %v729, 0
        %1859 = vmatprep.subr.mxu0 0.0
        %1860 = vmatpush1.msra.mxu0 0.0
        %1861 = vmatprep.subr.mxu0 0.0
        %1862 = vmatpush1.msra.mxu0 0.0
        %1863 = vmatprep.subr.mxu0 0.0
        %1864 = vmatpush1.msra.mxu0 0.0
        %1865 = vmatprep.subr.mxu0 0.0
        %1866 = vmatpush1.msra.mxu0 0.0
        %1867 = vmatprep.subr.mxu0 0.0
        %1868 = vmatpush1.msra.mxu0 0.0
        %1869 = vmatprep.subr.mxu0 0.0
        %1870 = vmatpush1.msra.mxu0 0.0
        %1871 = vmatprep.subr.mxu0 0.0
        %1872 = vmatpush1.msra.mxu0 0.0
        %1873 = vmatprep.subr.mxu0 0.0
        %1874 = vmatpush1.msra.mxu0 0.0
        %1875 = vmatprep.subr.mxu0 0.0
        %1876 = vmatpush1.msra.mxu0 0.0
        %1877 = vmatprep.subr.mxu0 0.0
        %1878 = vmatpush1.msra.mxu0 0.0
        %1879 = vmatprep.subr.mxu0 0.0
        %1880 = vmatpush1.msra.mxu0 0.0
        %1881 = vmatprep.subr.mxu0 0.0
        %1882 = vmatpush1.msra.mxu0 0.0
        %1883 = vmatprep.subr.mxu0 0.0
        %1884 = vmatpush1.msra.mxu0 0.0
        %1885 = vmatprep.subr.mxu0 0.0
        %1886 = vmatpush1.msra.mxu0 0.0
        %1887 = vmatprep.subr.mxu0 0.0
        %1888 = vmatpush1.msra.mxu0 0.0
        %1889 = vmatprep.subr.mxu0 0.0
        %1890 = vmatpush1.msra.mxu0 %v1855
        %1891 = vmatprep.subr.mxu0 0.0
        %1892 = vmatpush2.msra.mxu0 0.0
        %1893 = vmatprep.subr.mxu0 0.0
        %1894 = vmatpush2.msra.mxu0 0.0
        %1895 = vmatprep.subr.mxu0 0.0
        %1896 = vmatpush2.msra.mxu0 0.0
        %1897 = vmatprep.subr.mxu0 0.0
        %1898 = vmatpush2.msra.mxu0 0.0
        %1899 = vmatprep.subr.mxu0 0.0
        %1900 = vmatpush2.msra.mxu0 0.0
        %1901 = vmatprep.subr.mxu0 0.0
        %1902 = vmatpush2.msra.mxu0 0.0
        %1903 = vmatprep.subr.mxu0 0.0
        %1904 = vmatpush2.msra.mxu0 0.0
        %1905 = vmatprep.subr.mxu0 0.0
        %1906 = vmatpush2.msra.mxu0 0.0
        %1907 = vmatprep.subr.mxu0 0.0
        %1908 = vmatpush2.msra.mxu0 0.0
        %1909 = vmatprep.subr.mxu0 0.0
        %1910 = vmatpush2.msra.mxu0 0.0
        %1911 = vmatprep.subr.mxu0 0.0
        %1912 = vmatpush2.msra.mxu0 0.0
        %1913 = vmatprep.subr.mxu0 0.0
        %1914 = vmatpush2.msra.mxu0 0.0
        %1915 = vmatprep.subr.mxu0 0.0
        %1916 = vmatpush2.msra.mxu0 0.0
        %1917 = vmatprep.subr.mxu0 0.0
        %1918 = vmatpush2.msra.mxu0 0.0
        %1919 = vmatprep.subr.mxu0 0.0
        %1920 = vmatpush2.msra.mxu0 0.0
        %1921 = vmatprep.subr.mxu0 0.0
        %1922 = vmatpush2.msra.mxu0 0.0
        %1923 = vmatprep.mubr.f32.mxu0 0.0
        %1924 = vmatmul.mubr.f32.gmra.mxu0 %v1857
        %v1925 = vpop.f32.mrf.mxu0
        %v1926 = vadd.f32 0.0, %v1925
        %v1927 = vpop.f32.mrf.mxu0
        %1928 = vdwg.mxu0
        %v1929 = vadd.f32 %v1854, %v1926
        %v1930 = vlaneseq
        %v1931 = vshrl.u32 %v1930, 7
        %v1932 = vsub.s32 3, %v1931
        %v1933 = vrot.slane %v343, %v1932
        %v1934 = vadd.f32 %v1929, %v1933
        %v1935 = vadd.f32 %v339, %v1934
        %1936 = vadd.xlane.f32.xlu0 %v1935
        %v1937 = vpop.xlane.xlu0 %1936
        %v1938 = vmul.f32 %v1937, %v347
        %v1939 = vsub.f32 %v1935, %v1938
        %v1940 = vmul.f32 %v1939, %v1939
        %1941 = vadd.xlane.f32.xlu0 %v1940
        %v1942 = vpop.xlane.xlu0 %1941
        %v1943 = vmul.f32 %v1942, %v347
        %v1944 = vadd.f32 %v1943, 1e-05
        %v1945 = vrsqrt.pop %v1944
        %v1946 = vmul.f32 %v1939, %v1945
        %v1947 = vlaneseq
        %v1948 = vshrl.u32 %v1947, 7
        %v1949 = vsub.s32 4, %v1948
        %v1950 = vrot.slane %v343, %v1949
        %v1951 = vmul.f32 %v1946, %v1950
        %v1952 = vlaneseq
        %v1953 = vshrl.u32 %v1952, 7
        %v1954 = vsub.s32 5, %v1953
        %v1955 = vrot.slane %v343, %v1954
        %v1956 = vadd.f32 %v1951, %v1955
        %v1957 = vpack.c.bf16 %v1956, %v1956
        %s1958 = smul.addr %s368, 4
        %s1959 = scalar_lea.vmem [#allocation4], %s1958
        %v1960 = vld [vmem:[%s1959] sm:$0xff]
        %v1961 = vld [vmem:[%s1959 + $0x8] sm:$0xff]
        %v1962 = vld [vmem:[%s1959 + $0x10] sm:$0xff]
        %v1963 = vld [vmem:[%s1959 + $0x18] sm:$0xff]
        %v1964 = vld [vmem:[%s1959 + $0x20] sm:$0xff]
        %v1965 = vld [vmem:[%s1959 + $0x28] sm:$0xff]
        %v1966 = vld [vmem:[%s1959 + $0x30] sm:$0xff]
        %v1967 = vld [vmem:[%s1959 + $0x38] sm:$0xff]
        %v1968 = vld [vmem:[%s1959 + $0x40] sm:$0xff]
        %v1969 = vld [vmem:[%s1959 + $0x48] sm:$0xff]
        %v1970 = vld [vmem:[%s1959 + $0x50] sm:$0xff]
        %v1971 = vld [vmem:[%s1959 + $0x58] sm:$0xff]
        %v1972 = vld [vmem:[%s1959 + $0x60] sm:$0xff]
        %v1973 = vld [vmem:[%s1959 + $0x68] sm:$0xff]
        %v1974 = vld [vmem:[%s1959 + $0x70] sm:$0xff]
        %v1975 = vld [vmem:[%s1959 + $0x78] sm:$0xff]
        %v1976 = vlaneseq
        %v1977 = vshrl.u32 %v1976, 7
        %v1978 = vsub.s32 6, %v1977
        %v1979 = vrot.slane %v343, %v1978
        %v1980 = vlaneseq
        %v1981 = vshrl.u32 %v1980, 7
        %v1982 = vsub.s32 6, %v1981
        %v1983 = vrot.slane %v344, %v1982
        %v2000 = vunpack.c.l.b16 %v1960
        %v2001 = vunpack.c.h.b16 %v1960
        %v2002 = vunpack.c.l.b16 %v1961
        %v2003 = vunpack.c.h.b16 %v1961
        %v2004 = vunpack.c.l.b16 %v1962
        %v2005 = vunpack.c.h.b16 %v1962
        %v2006 = vunpack.c.l.b16 %v1963
        %v2007 = vunpack.c.h.b16 %v1963
        %v2008 = vunpack.c.l.b16 %v1964
        %v2009 = vunpack.c.h.b16 %v1964
        %v2010 = vunpack.c.l.b16 %v1965
        %v2011 = vunpack.c.h.b16 %v1965
        %v2012 = vunpack.c.l.b16 %v1966
        %v2013 = vunpack.c.h.b16 %v1966
        %v2014 = vunpack.c.l.b16 %v1967
        %v2015 = vunpack.c.h.b16 %v1967
        %v2016 = vunpack.c.l.b16 %v1968
        %v2017 = vunpack.c.h.b16 %v1968
        %v2018 = vunpack.c.l.b16 %v1969
        %v2019 = vunpack.c.h.b16 %v1969
        %v2020 = vunpack.c.l.b16 %v1970
        %v2021 = vunpack.c.h.b16 %v1970
        %v2022 = vunpack.c.l.b16 %v1971
        %v2023 = vunpack.c.h.b16 %v1971
        %v2024 = vunpack.c.l.b16 %v1972
        %v2025 = vunpack.c.h.b16 %v1972
        %v2026 = vunpack.c.l.b16 %v1973
        %v2027 = vunpack.c.h.b16 %v1973
        %v2028 = vunpack.c.l.b16 %v1974
        %v2029 = vunpack.c.h.b16 %v1974
        %v2030 = vunpack.c.l.b16 %v1975
        %v2031 = vunpack.c.h.b16 %v1975
        %v2032 = vpack.c.b16 %v2002, %v2000
        %v2033 = vpack.c.b16 %v2003, %v2001
        %v2034 = vpack.c.b16 %v2006, %v2004
        %v2035 = vpack.c.b16 %v2007, %v2005
        %v2036 = vpack.c.b16 %v2010, %v2008
        %v2037 = vpack.c.b16 %v2011, %v2009
        %v2038 = vpack.c.b16 %v2014, %v2012
        %v2039 = vpack.c.b16 %v2015, %v2013
        %v2040 = vpack.c.b16 %v2018, %v2016
        %v2041 = vpack.c.b16 %v2019, %v2017
        %v2042 = vpack.c.b16 %v2022, %v2020
        %v2043 = vpack.c.b16 %v2023, %v2021
        %v2044 = vpack.c.b16 %v2026, %v2024
        %v2045 = vpack.c.b16 %v2027, %v2025
        %v2046 = vpack.c.b16 %v2030, %v2028
        %v2047 = vpack.c.b16 %v2031, %v2029
        %2064 = vmatprep.subr.bf16.mxu0 %v2047
        %2065 = vmatpush1.bf16.msra.mxu0 %v2046
        %2066 = vmatprep.subr.bf16.mxu0 %v2045
        %2067 = vmatpush1.bf16.msra.mxu0 %v2044
        %2068 = vmatprep.subr.bf16.mxu0 %v2043
        %2069 = vmatpush1.bf16.msra.mxu0 %v2042
        %2070 = vmatprep.subr.bf16.mxu0 %v2041
        %2071 = vmatpush1.bf16.msra.mxu0 %v2040
        %2072 = vmatprep.subr.bf16.mxu0 %v2039
        %2073 = vmatpush1.bf16.msra.mxu0 %v2038
        %2074 = vmatprep.subr.bf16.mxu0 %v2037
        %2075 = vmatpush1.bf16.msra.mxu0 %v2036
        %2076 = vmatprep.subr.bf16.mxu0 %v2035
        %2077 = vmatpush1.bf16.msra.mxu0 %v2034
        %2078 = vmatprep.subr.bf16.mxu0 %v2033
        %2079 = vmatpush1.bf16.msra.mxu0 %v2032
        %2080 = vmatprep.subr.bf16.mxu0 0
        %2081 = vmatpush2.bf16.msra.mxu0 0
        %2082 = vmatprep.subr.bf16.mxu0 0
        %2083 = vmatpush2.bf16.msra.mxu0 0
        %2084 = vmatprep.subr.bf16.mxu0 0
        %2085 = vmatpush2.bf16.msra.mxu0 0
        %2086 = vmatprep.subr.bf16.mxu0 0
        %2087 = vmatpush2.bf16.msra.mxu0 0
        %2088 = vmatprep.subr.bf16.mxu0 0
        %2089 = vmatpush2.bf16.msra.mxu0 0
        %2090 = vmatprep.subr.bf16.mxu0 0
        %2091 = vmatpush2.bf16.msra.mxu0 0
        %2092 = vmatprep.subr.bf16.mxu0 0
        %2093 = vmatpush2.bf16.msra.mxu0 0
        %2094 = vmatprep.subr.bf16.mxu0 0
        %2095 = vmatpush2.bf16.msra.mxu0 0
        %2096 = vmatprep.mubr.bf16.mxu0 0
        %2097 = vmatmul.mubr.bf16.gmra.mxu0 %v1957
        %v2098 = vpop.f32.mrf.mxu0
        %v2099 = vadd.f32 %v1979, %v2098
        %v2100 = vpop.f32.mrf.mxu0
        %v2101 = vadd.f32 %v1983, %v2100
        %v2102 = vpop.f32.mrf.mxu0
        %v2103 = vpop.f32.mrf.mxu0
        %2104 = vdwg.mxu0
        %v2105 = vmul.f32 %v2099, 0.5
        %v2106 = vmul.f32 %v2101, 0.5
        %v2107 = vmul.f32 %v2099, 0.044715
        %v2108 = vmul.f32 %v2101, 0.044715
        %v2109 = vmul.f32 %v2107, %v2099
        %v2110 = vmul.f32 %v2108, %v2101
        %v2111 = vmul.f32 %v2109, %v2099
        %v2112 = vmul.f32 %v2110, %v2101
        %v2113 = vadd.f32 %v2099, %v2111
        %v2114 = vadd.f32 %v2101, %v2112
        %v2115 = vmul.f32 %v2113, 0.7978846
        %v2116 = vmul.f32 %v2114, 0.7978846
        %v2117 = vtanh.pop %v2115
        %v2118 = vtanh.pop %v2116
        %v2119 = vadd.f32 %v2117, 1.0
        %v2120 = vadd.f32 %v2118, 1.0
        %v2121 = vmul.f32 %v2105, %v2119
        %v2122 = vmul.f32 %v2106, %v2120
        %v2123 = vpack.c.bf16 %v2121, %v2121
        %v2124 = vpack.c.bf16 %v2122, %v2122
        %s2125 = smul.addr %s368, 4
        %s2126 = scalar_lea.vmem [#allocation6], %s2125
        %v2127 = vld [vmem:[%s2126] sm:$0xf]
        %v2128 = vld [vmem:[%s2126 + $0x4] sm:$0xf]
        %v2129 = vld [vmem:[%s2126 + $0x8] sm:$0xf]
        %v2130 = vld [vmem:[%s2126 + $0xc] sm:$0xf]
        %v2131 = vld [vmem:[%s2126 + $0x10] sm:$0xf]
        %v2132 = vld [vmem:[%s2126 + $0x14] sm:$0xf]
        %v2133 = vld [vmem:[%s2126 + $0x18] sm:$0xf]
        %v2134 = vld [vmem:[%s2126 + $0x1c] sm:$0xf]
        %v2135 = vld [vmem:[%s2126 + $0x20] sm:$0xf]
        %v2136 = vld [vmem:[%s2126 + $0x24] sm:$0xf]
        %v2137 = vld [vmem:[%s2126 + $0x28] sm:$0xf]
        %v2138 = vld [vmem:[%s2126 + $0x2c] sm:$0xf]
        %v2139 = vld [vmem:[%s2126 + $0x30] sm:$0xf]
        %v2140 = vld [vmem:[%s2126 + $0x34] sm:$0xf]
        %v2141 = vld [vmem:[%s2126 + $0x38] sm:$0xf]
        %v2142 = vld [vmem:[%s2126 + $0x3c] sm:$0xf]
        %v2143 = vld [vmem:[%s2126 + $0x40] sm:$0xf]
        %v2144 = vld [vmem:[%s2126 + $0x44] sm:$0xf]
        %v2145 = vld [vmem:[%s2126 + $0x48] sm:$0xf]
        %v2146 = vld [vmem:[%s2126 + $0x4c] sm:$0xf]
        %v2147 = vld [vmem:[%s2126 + $0x50] sm:$0xf]
        %v2148 = vld [vmem:[%s2126 + $0x54] sm:$0xf]
        %v2149 = vld [vmem:[%s2126 + $0x58] sm:$0xf]
        %v2150 = vld [vmem:[%s2126 + $0x5c] sm:$0xf]
        %v2151 = vld [vmem:[%s2126 + $0x60] sm:$0xf]
        %v2152 = vld [vmem:[%s2126 + $0x64] sm:$0xf]
        %v2153 = vld [vmem:[%s2126 + $0x68] sm:$0xf]
        %v2154 = vld [vmem:[%s2126 + $0x6c] sm:$0xf]
        %v2155 = vld [vmem:[%s2126 + $0x70] sm:$0xf]
        %v2156 = vld [vmem:[%s2126 + $0x74] sm:$0xf]
        %v2157 = vld [vmem:[%s2126 + $0x78] sm:$0xf]
        %v2158 = vld [vmem:[%s2126 + $0x7c] sm:$0xf]
        %v2159 = vlaneseq
        %v2160 = vshrl.u32 %v2159, 7
        %v2161 = vsub.s32 7, %v2160
        %v2162 = vrot.slane %v343, %v2161
        %v2195 = vunpack.c.l.b16 %v2127
        %v2196 = vunpack.c.l.b16 %v2128
        %v2197 = vunpack.c.l.b16 %v2129
        %v2198 = vunpack.c.l.b16 %v2130
        %v2199 = vunpack.c.l.b16 %v2131
        %v2200 = vunpack.c.l.b16 %v2132
        %v2201 = vunpack.c.l.b16 %v2133
        %v2202 = vunpack.c.l.b16 %v2134
        %v2203 = vunpack.c.l.b16 %v2135
        %v2204 = vunpack.c.l.b16 %v2136
        %v2205 = vunpack.c.l.b16 %v2137
        %v2206 = vunpack.c.l.b16 %v2138
        %v2207 = vunpack.c.l.b16 %v2139
        %v2208 = vunpack.c.l.b16 %v2140
        %v2209 = vunpack.c.l.b16 %v2141
        %v2210 = vunpack.c.l.b16 %v2142
        %v2211 = vunpack.c.l.b16 %v2143
        %v2212 = vunpack.c.l.b16 %v2144
        %v2213 = vunpack.c.l.b16 %v2145
        %v2214 = vunpack.c.l.b16 %v2146
        %v2215 = vunpack.c.l.b16 %v2147
        %v2216 = vunpack.c.l.b16 %v2148
        %v2217 = vunpack.c.l.b16 %v2149
        %v2218 = vunpack.c.l.b16 %v2150
        %v2219 = vunpack.c.l.b16 %v2151
        %v2220 = vunpack.c.l.b16 %v2152
        %v2221 = vunpack.c.l.b16 %v2153
        %v2222 = vunpack.c.l.b16 %v2154
        %v2223 = vunpack.c.l.b16 %v2155
        %v2224 = vunpack.c.l.b16 %v2156
        %v2225 = vunpack.c.l.b16 %v2157
        %v2226 = vunpack.c.l.b16 %v2158
        %v2227 = vpack.c.b16 %v2196, %v2195
        %v2228 = vpack.c.b16 %v2198, %v2197
        %v2229 = vpack.c.b16 %v2200, %v2199
        %v2230 = vpack.c.b16 %v2202, %v2201
        %v2231 = vpack.c.b16 %v2204, %v2203
        %v2232 = vpack.c.b16 %v2206, %v2205
        %v2233 = vpack.c.b16 %v2208, %v2207
        %v2234 = vpack.c.b16 %v2210, %v2209
        %v2235 = vpack.c.b16 %v2212, %v2211
        %v2236 = vpack.c.b16 %v2214, %v2213
        %v2237 = vpack.c.b16 %v2216, %v2215
        %v2238 = vpack.c.b16 %v2218, %v2217
        %v2239 = vpack.c.b16 %v2220, %v2219
        %v2240 = vpack.c.b16 %v2222, %v2221
        %v2241 = vpack.c.b16 %v2224, %v2223
        %v2242 = vpack.c.b16 %v2226, %v2225
        %2259 = vmatprep.subr.bf16.mxu0 0
        %2260 = vmatpush1.bf16.msra.mxu0 %v2234
        %2261 = vmatprep.subr.bf16.mxu0 0
        %2262 = vmatpush1.bf16.msra.mxu0 %v2233
        %2263 = vmatprep.subr.bf16.mxu0 0
        %2264 = vmatpush1.bf16.msra.mxu0 %v2232
        %2265 = vmatprep.subr.bf16.mxu0 0
        %2266 = vmatpush1.bf16.msra.mxu0 %v2231
        %2267 = vmatprep.subr.bf16.mxu0 0
        %2268 = vmatpush1.bf16.msra.mxu0 %v2230
        %2269 = vmatprep.subr.bf16.mxu0 0
        %2270 = vmatpush1.bf16.msra.mxu0 %v2229
        %2271 = vmatprep.subr.bf16.mxu0 0
        %2272 = vmatpush1.bf16.msra.mxu0 %v2228
        %2273 = vmatprep.subr.bf16.mxu0 0
        %2274 = vmatpush1.bf16.msra.mxu0 %v2227
        %2275 = vmatprep.subr.bf16.mxu0 0
        %2276 = vmatpush2.bf16.msra.mxu0 %v2242
        %2277 = vmatprep.subr.bf16.mxu0 0
        %2278 = vmatpush2.bf16.msra.mxu0 %v2241
        %2279 = vmatprep.subr.bf16.mxu0 0
        %2280 = vmatpush2.bf16.msra.mxu0 %v2240
        %2281 = vmatprep.subr.bf16.mxu0 0
        %2282 = vmatpush2.bf16.msra.mxu0 %v2239
        %2283 = vmatprep.subr.bf16.mxu0 0
        %2284 = vmatpush2.bf16.msra.mxu0 %v2238
        %2285 = vmatprep.subr.bf16.mxu0 0
        %2286 = vmatpush2.bf16.msra.mxu0 %v2237
        %2287 = vmatprep.subr.bf16.mxu0 0
        %2288 = vmatpush2.bf16.msra.mxu0 %v2236
        %2289 = vmatprep.subr.bf16.mxu0 0
        %2290 = vmatpush2.bf16.msra.mxu0 %v2235
        %2291 = vmatprep.mubr.bf16.mxu0 %v2124
        %2292 = vmatmul.mubr.bf16.gmra.mxu0 %v2123
        %v2293 = vpop.f32.mrf.mxu0
        %v2294 = vadd.f32 %v2162, %v2293
        %v2295 = vpop.f32.mrf.mxu0
        %v2296 = vpop.f32.mrf.mxu0
        %v2297 = vpop.f32.mrf.mxu0
        %2298 = vdwg.mxu0
        %v2299 = vadd.f32 %v1935, %v2294
        %2300 = vst [vmem:[%s331] sm:$0xff] %v2299
        %p2301 = scmp.lt.s32.totalorder %s24, 1
        %s2302 = scalar_select %p2301, %s24, 1
        %s2303 = smul.addr %s2302, 8
        %s2304 = scalar_lea.vmem %s6, %s2303
        // Predicated region
        $region69: #{channel_transformer_layer_forward.1} parent=43 // pred_check
          %p2305 = pneg %p181
        $region70: #{channel_transformer_layer_forward.1} parent=43 // pred_check_branch
          %2307 = sbr.rel (%p2305) target = $region72
        $region71: #{channel_transformer_layer_forward.1} parent=43 // pred_region
          _
        $region72: #{channel_transformer_layer_forward.1} parent=43 // pred_fallthru
          _
      $region44: #{channel_transformer_layer_forward.1} parent=5 // pred_fallthru
        _
      %p2308 = scmp.le.s32.totalorder 2, %s15
      // Predicated region
      $region73: #{channel_transformer_layer_forward.1} parent=5 // pred_check
        %p2309 = pneg %p2308
      $region74: #{channel_transformer_layer_forward.1} parent=5 // pred_check_branch
        %2311 = sbr.rel (%p2309) target = $region76
      $region75: #{channel_transformer_layer_forward.1} parent=5 // pred_region
        %s2312 = ssub.s32 %s15, 2
        // Predicated region
        $region77: #{channel_transformer_layer_forward.1} parent=75 // pred_check
          %p2313 = pneg %p187
        $region78: #{channel_transformer_layer_forward.1} parent=75 // pred_check_branch
          %2315 = sbr.rel (%p2313) target = $region80
        $region79: #{channel_transformer_layer_forward.1} parent=75 // pred_region
          %p2316 = scmp.lt.s32.totalorder %s26, 1
          %s2317 = scalar_select %p2316, %s26, 1
          %s2318 = smul.addr %s2317, 8
          %s2319 = scalar_lea.vmem %s6, %s2318
        $region80: #{channel_transformer_layer_forward.1} parent=75 // pred_fallthru
          _
      $region76: #{channel_transformer_layer_forward.1} parent=5 // pred_fallthru
        _
    $region6: #{channel_transformer_layer_forward.1} parent=1 // loop_footer
      %s19 = sadd.s32 1, %s15
    $region7: #{channel_transformer_layer_forward.1} parent=1 // loop_footer_branch
      %14 = sbr.rel target = $region3
    $region8: #{channel_transformer_layer_forward.1} parent=1 // loop_exit
      _
    %2320 = vsyncpa [#allocation3], 1
    %s2321 = scalar_lea.sflag [#allocation3], 1
    %2322 = vsyncpa %s2321, 1
    %2323 = vsyncpa [#allocation5], 1
    %2324 = vsyncpa [#allocation8], 1

</llo_original>
